<compile_context>
chip_gen: v7x
topology: tpu7x:2x2x1
jax: 0.10.0
libtpu: 0.0.40
codegen_flags: <defaults>
</compile_context>

<pallas_src>
import functools
import math

import jax
import jax.numpy as jnp
from jax import lax
from jax.experimental import pallas as pl
from jax.experimental.pallas import tpu as pltpu

try:
    from jax.errors import JaxRuntimeError as _JaxRuntimeError
except ImportError:  # very old jax
    _JaxRuntimeError = None

# Specific exception types for the "single-buffered weights" fallback path.
# (No bare `except Exception`: genuine kernel bugs raise one of these too, but
# the fallback runs the IDENTICAL kernel, so they re-raise instead of being
# masked.)
_FALLBACK_EXCS = tuple(
    e for e in (TypeError, ValueError, NotImplementedError,
                getattr(pltpu, "LoweringException", None), _JaxRuntimeError)
    if e is not None)


def _layernorm(x, gamma, beta, eps=1e-5):
    # PyTorch nn.LayerNorm: biased variance, eps inside sqrt.
    mean = jnp.mean(x, axis=-1, keepdims=True)
    var = jnp.mean((x - mean) ** 2, axis=-1, keepdims=True)
    return (x - mean) * lax.rsqrt(var + eps) * gamma + beta


def clip_layer_kernel(
    x_ref,
    ln1_g_ref, ln1_b_ref,
    in_w_ref, in_b_ref,
    out_w_ref, out_b_ref,
    ln2_g_ref, ln2_b_ref,
    l1_w_ref, l1_b_ref,
    l2_w_ref, l2_b_ref,
    o_ref,
    qkv_scr,    # (Bt, S, 3E) bf16 : staged q,k,v (1/sqrt(d_head) folded into q)
    h_scr,      # (Bt, S, E)  bf16 : head outputs, then ln2(x1) for the MLP
    acc_scr,    # (Bt*S, E)   f32  : residual+bias accumulator for the MLP
    *, n_head, heads_per_group, mlp_chunk,
):
    Bt, S, E = x_ref.shape
    bt_s = Bt * S
    d_head = E // n_head
    n_groups = n_head // heads_per_group
    gwidth = heads_per_group * d_head
    hidden = l1_w_ref.shape[1]

    # ---- block 1: LN -> causal multi-head self-attention -> residual --------
    h1 = _layernorm(x_ref[...].reshape(bt_s, E), ln1_g_ref[...], ln1_b_ref[...])
    qkv = jnp.dot(h1.astype(jnp.bfloat16), in_w_ref[...],
                  preferred_element_type=jnp.float32) + in_b_ref[...]
    qkv_scr[...] = qkv.reshape(Bt, S, 3 * E).astype(jnp.bfloat16)

    # Additive causal bias, hoisted out of the head loop (finite -1e30, not -inf).
    row = lax.broadcasted_iota(jnp.int32, (S, S), 0)
    col = lax.broadcasted_iota(jnp.int32, (S, S), 1)
    mask_bias = jnp.where(col <= row, jnp.float32(0.0), jnp.float32(-1e30))

    def attn_group(b, lo):
        # One lane-dense slab load per head group (gwidth lanes, 128 for d_head=64
        # pairs); heads are split in-register.
        q_slab = qkv_scr[b, :, pl.ds(lo, gwidth)]
        k_slab = qkv_scr[b, :, pl.ds(E + lo, gwidth)]
        v_slab = qkv_scr[b, :, pl.ds(2 * E + lo, gwidth)]
        outs = []
        for hh in range(heads_per_group):           # tiny static unroll
            s0 = hh * d_head
            qh = q_slab[:, s0:s0 + d_head]
            kh = k_slab[:, s0:s0 + d_head]
            vh = v_slab[:, s0:s0 + d_head]
            # q @ k^T without materializing a transpose (contract last dims).
            scores = lax.dot_general(
                qh, kh, (((1,), (1,)), ((), ())),
                preferred_element_type=jnp.float32) + mask_bias        # (S,S) f32
            m = jnp.max(scores, axis=-1, keepdims=True)
            p = jnp.exp(scores - m)                                    # unnormalized
            rs = jnp.sum(p, axis=-1, keepdims=True)
            head = jnp.dot(p.astype(jnp.bfloat16), vh,
                           preferred_element_type=jnp.float32)         # (S,d) f32
            # Deferred softmax normalization: rescale the small (S,d) result, not
            # the (S,S) probability matrix.  approx reciprocal (EUP) is deliberate:
            # its ~1e-3 rel. error is far below the bf16-matmul tolerance.
            head = head * pl.reciprocal(rs, approx=True)
            outs.append(head.astype(jnp.bfloat16))
        out = outs[0] if heads_per_group == 1 else jnp.concatenate(outs, axis=-1)
        h_scr[b, :, pl.ds(lo, gwidth)] = out                           # lane-dense

    total_groups = Bt * n_groups
    if total_groups == 1:
        attn_group(0, 0)
    else:
        def attn_body(idx, carry):
            if n_groups == 1:
                attn_group(idx, 0)
            else:
                b = idx // n_groups
                g = idx - b * n_groups
                attn_group(b, pl.multiple_of(g * gwidth, gwidth))
            return carry
        lax.fori_loop(0, total_groups, attn_body, 0)

    # Single big out-projection: (Bt*S, E) @ (E, E) with K = E (fills the MXU).
    attn = jnp.dot(h_scr[...].reshape(bt_s, E), out_w_ref[...],
                   preferred_element_type=jnp.float32) + out_b_ref[...]
    x1 = attn + x_ref[...].reshape(bt_s, E)

    # ---- block 2: LN -> MLP (quick-GELU, hidden dim tiled) -> residual -------
    h2 = _layernorm(x1, ln2_g_ref[...], ln2_b_ref[...])
    h_scr[...] = h2.astype(jnp.bfloat16).reshape(Bt, S, E)   # reuse as MLP input
    acc_scr[...] = x1 + l2_b_ref[...]                        # residual + l2 bias

    def mlp_step(co):
        a = jnp.dot(h_scr[...].reshape(bt_s, E),
                    l1_w_ref[:, pl.ds(co, mlp_chunk)],
                    preferred_element_type=jnp.float32) + l1_b_ref[:, pl.ds(co, mlp_chunk)]
        a = a * jax.nn.sigmoid(1.702 * a)                    # quick-GELU, f32
        acc_scr[...] += jnp.dot(a.astype(jnp.bfloat16),
                                l2_w_ref[pl.ds(co, mlp_chunk), :],
                                preferred_element_type=jnp.float32)

    n_chunks = hidden // mlp_chunk
    if n_chunks == 1:
        mlp_step(0)
    else:
        def mlp_body(c, carry):
            mlp_step(pl.multiple_of(c * mlp_chunk, mlp_chunk))
            return carry
        lax.fori_loop(0, n_chunks, mlp_body, 0)

    o_ref[...] = acc_scr[...].reshape(Bt, S, E).astype(o_ref.dtype)


# ------------------------------ build helpers --------------------------------
def _pick_batch_block(B):
    # Prefer powers of two (no awkward sublane padding) and keep >= 2 grid steps
    # so v7x's 2 TensorCores both get work via dimension_semantics=("parallel",).
    for bb in (4, 2, 1):
        if B % bb == 0 and B // bb >= 2:
            return bb
    for bb in (4, 2, 1):
        if B % bb == 0:
            return bb
    return 1


def _pick_heads_per_group(n_head, d_head):
    # Group heads so one slab load is ~128 lanes (2 heads at d_head=64).
    if d_head >= 128 or 128 % d_head != 0:
        return 1
    hpg = min(n_head, 128 // d_head)
    while hpg > 1 and n_head % hpg != 0:
        hpg -= 1
    return max(hpg, 1)


def _pick_mlp_chunk(hidden):
    if hidden <= 1024:
        return hidden
    for cand in (1024, 512, 768, 640, 384, 256, 128):
        if hidden % cand == 0:
            return cand
    return hidden


def _pick_vmem_limit_bytes():
    # Per-generation budget: leave headroom for compiler scratch and the
    # double-buffered x/out blocks (v7x only has 64 MiB VMEM per TensorCore).
    try:
        cap = int(pltpu.get_tpu_info().vmem_capacity_bytes)
    except Exception:  # hardware query unavailable (probe only; kernel errors are not caught here)
        cap = 0
    if not cap:
        return 48 * 1024 * 1024
    return max(32 * 1024 * 1024, min(cap - 16 * 1024 * 1024, 96 * 1024 * 1024))


def _build_call(*, B, S, E, n_head, heads_per_group, mlp_chunk, batch_block,
                param_shapes, out_dtype, vmem_limit, single_buffer_weights):
    def weight_spec(shape):
        # Constant index_map across the grid: the weights never change, so a
        # single VMEM buffer suffices (default double-buffering is pure waste;
        # it matters on v7x at real CLIP sizes).
        if single_buffer_weights:
            return pl.BlockSpec(shape, lambda b: (0, 0),
                                pipeline_mode=pl.Buffered(buffer_count=1))
        return pl.BlockSpec(shape, lambda b: (0, 0))

    in_specs = [pl.BlockSpec((batch_block, S, E), lambda b: (b, 0, 0))]
    in_specs += [weight_spec(shape) for shape in param_shapes]

    kernel = functools.partial(clip_layer_kernel, n_head=n_head,
                               heads_per_group=heads_per_group,
                               mlp_chunk=mlp_chunk)
    return pl.pallas_call(
        kernel,
        out_shape=jax.ShapeDtypeStruct((B, S, E), out_dtype),
        grid_spec=pltpu.PrefetchScalarGridSpec(
            num_scalar_prefetch=0,
            grid=(B // batch_block,),
            in_specs=in_specs,
            out_specs=pl.BlockSpec((batch_block, S, E), lambda b: (b, 0, 0)),
            scratch_shapes=[
                pltpu.VMEM((batch_block, S, 3 * E), jnp.bfloat16),
                pltpu.VMEM((batch_block, S, E), jnp.bfloat16),
                pltpu.VMEM((batch_block * S, E), jnp.float32),
            ],
        ),
        compiler_params=pltpu.CompilerParams(
            dimension_semantics=("parallel",),
            vmem_limit_bytes=vmem_limit,
        ),
    )


def clip_layer(x, params, n_head, batch_block=None):
    B, S, E = x.shape
    assert E % n_head == 0
    d_head = E // n_head
    hidden = params["l1_w"].shape[1]

    if batch_block is None:
        batch_block = _pick_batch_block(B)
    assert B % batch_block == 0

    heads_per_group = _pick_heads_per_group(n_head, d_head)
    mlp_chunk = _pick_mlp_chunk(hidden)

    bf16, f32 = jnp.bfloat16, jnp.float32
    # Fold 1/sqrt(d_head) into the q columns of the in-projection (one-time
    # host-side weight transform), so the kernel never scales the (Bt*S, 3E)
    # activation.
    colscale = jnp.where(jnp.arange(3 * E) < E,
                         jnp.float32(1.0 / math.sqrt(d_head)), jnp.float32(1.0))
    in_w = (params["in_w"].astype(f32) * colscale).astype(bf16)
    in_b = params["in_b"].astype(f32) * colscale

    param_list = [
        params["ln1_g"].astype(f32), params["ln1_b"].astype(f32),
        in_w, in_b,
        params["out_w"].astype(bf16), params["out_b"].astype(f32),
        params["ln2_g"].astype(f32), params["ln2_b"].astype(f32),
        params["l1_w"].astype(bf16), params["l1_b"].astype(f32),
        params["l2_w"].astype(bf16), params["l2_b"].astype(f32),
    ]
    param_shapes = [tuple(p.shape) for p in param_list]

    # TODO(synk): for very large CLIP variants (E >= 1024, hidden up to 5120),
    # stream l1_w / l2_w in BlockSpec tiles on an extra grid axis instead of
    # residing all weights in VMEM (needed to fit v7x's 64 MiB VMEM).

    common = dict(B=B, S=S, E=E, n_head=n_head, heads_per_group=heads_per_group,
                  mlp_chunk=mlp_chunk, batch_block=batch_block,
                  param_shapes=param_shapes, out_dtype=x.dtype,
                  vmem_limit=_pick_vmem_limit_bytes())
    try:
        call = _build_call(single_buffer_weights=True, **common)
        return call(x, *param_list)
    except _FALLBACK_EXCS:
        # pl.Buffered(buffer_count=1) rejected by this jax/Mosaic build: rebuild
        # with default (double-buffered) weight BlockSpecs.  The fallback runs the
        # identical kernel, so genuine shape/dtype/lowering bugs re-raise here.
        call = _build_call(single_buffer_weights=False, **common)
        return call(x, *param_list)


# ---------------------------- pure-JAX reference -----------------------------
def clip_layer_ref(x, params, n_head):
    B, S, E = x.shape
    d_head = E // n_head

    def ln(v, g, b):
        mu = jnp.mean(v, axis=-1, keepdims=True)
        var = jnp.mean((v - mu) ** 2, axis=-1, keepdims=True)
        return (v - mu) / jnp.sqrt(var + 1e-5) * g + b

    residue = x
    h = ln(x, params["ln1_g"], params["ln1_b"])
    qkv = h @ params["in_w"] + params["in_b"]
    q, k, v = jnp.split(qkv, 3, axis=-1)
    q = q.reshape(B, S, n_head, d_head).transpose(0, 2, 1, 3)
    k = k.reshape(B, S, n_head, d_head).transpose(0, 2, 1, 3)
    v = v.reshape(B, S, n_head, d_head).transpose(0, 2, 1, 3)
    w = jnp.einsum("bhqd,bhkd->bhqk", q, k)
    mask = jnp.triu(jnp.ones((S, S), dtype=bool), 1)
    w = jnp.where(mask, -jnp.inf, w) / math.sqrt(d_head)
    w = jax.nn.softmax(w, axis=-1)
    o = jnp.einsum("bhqk,bhkd->bhqd", w, v).transpose(0, 2, 1, 3).reshape(B, S, E)
    o = o @ params["out_w"] + params["out_b"]
    x1 = o + residue

    residue2 = x1
    h2 = ln(x1, params["ln2_g"], params["ln2_b"])
    h2 = h2 @ params["l1_w"] + params["l1_b"]
    h2 = h2 * jax.nn.sigmoid(1.702 * h2)
    h2 = h2 @ params["l2_w"] + params["l2_b"]
    return h2 + residue2


if __name__ == "__main__":
    B, S, E, n_head = 2, 8, 32, 4

    key = jax.random.PRNGKey(0)
    ks = jax.random.split(key, 16)

    def init(k, shape, scale=0.05):
        return (scale * jax.random.normal(k, shape)).astype(jnp.float32)

    params = {
        # LayerNorm affine params stored as (1, E) for 2D VMEM refs.
        "ln1_g": 1.0 + init(ks[0], (1, E), 0.1),
        "ln1_b": init(ks[1], (1, E), 0.1),
        "ln2_g": 1.0 + init(ks[2], (1, E), 0.1),
        "ln2_b": init(ks[3], (1, E), 0.1),
        # Linear weights stored as (in, out)  (i.e. PyTorch weight transposed).
        "in_w": init(ks[4], (E, 3 * E)),
        "in_b": init(ks[5], (1, 3 * E)),
        "out_w": init(ks[6], (E, E)),
        "out_b": init(ks[7], (1, E)),
        "l1_w": init(ks[8], (E, 4 * E)),
        "l1_b": init(ks[9], (1, 4 * E)),
        "l2_w": init(ks[10], (4 * E, E)),
        "l2_b": init(ks[11], (1, E)),
    }

    x = jax.random.normal(ks[12], (B, S, E), dtype=jnp.float32)

    out = jax.block_until_ready(clip_layer(x, params, n_head))
    ref = clip_layer_ref(x, params, n_head)

    assert out.shape == (B, S, E)
    # Matmuls run with bf16 weights/activations (f32 accumulation) and an approx
    # softmax reciprocal, so compare against the all-f32 reference with a
    # loosened tolerance.
    assert jnp.allclose(out, ref, atol=2e-2, rtol=2e-2), "mismatch vs reference"

    print("KERNEL_OK")
</pallas_src>

<mosaic_0001>
module attributes {stable_mosaic.version = 11 : i64} {
  func.func @clip_layer_kernel(%arg0: i32, %arg1: memref<1x8x32xf32, #tpu.memory_space<vmem>>, %arg2: memref<1x32xf32, #tpu.memory_space<vmem>>, %arg3: memref<1x32xf32, #tpu.memory_space<vmem>>, %arg4: memref<32x96xbf16, #tpu.memory_space<vmem>>, %arg5: memref<1x96xf32, #tpu.memory_space<vmem>>, %arg6: memref<32x32xbf16, #tpu.memory_space<vmem>>, %arg7: memref<1x32xf32, #tpu.memory_space<vmem>>, %arg8: memref<1x32xf32, #tpu.memory_space<vmem>>, %arg9: memref<1x32xf32, #tpu.memory_space<vmem>>, %arg10: memref<32x128xbf16, #tpu.memory_space<vmem>>, %arg11: memref<1x128xf32, #tpu.memory_space<vmem>>, %arg12: memref<128x32xbf16, #tpu.memory_space<vmem>>, %arg13: memref<1x32xf32, #tpu.memory_space<vmem>>, %arg14: memref<1x8x32xf32, #tpu.memory_space<vmem>>, %arg15: memref<1x8x96xbf16, #tpu.memory_space<vmem>>, %arg16: memref<1x8x32xbf16, #tpu.memory_space<vmem>>, %arg17: memref<8x32xf32, #tpu.memory_space<vmem>>) attributes {dimension_semantics = [#tpu.dimension_semantics<parallel>], iteration_bounds = array<i64: 2>, scalar_prefetch = 0 : i64, scratch_operands = 3 : i64, tpu.core_type = #tpu.core_type<tc>, window_params = [{transform_indices = @transform_0, window_bounds = array<i64: 1, 8, 32>}, {pipeline_mode = #tpu.pipeline_mode<synchronous>, transform_indices = @transform_1, window_bounds = array<i64: 1, 32>}, {pipeline_mode = #tpu.pipeline_mode<synchronous>, transform_indices = @transform_2, window_bounds = array<i64: 1, 32>}, {pipeline_mode = #tpu.pipeline_mode<synchronous>, transform_indices = @transform_3, window_bounds = array<i64: 32, 96>}, {pipeline_mode = #tpu.pipeline_mode<synchronous>, transform_indices = @transform_4, window_bounds = array<i64: 1, 96>}, {pipeline_mode = #tpu.pipeline_mode<synchronous>, transform_indices = @transform_5, window_bounds = array<i64: 32, 32>}, {pipeline_mode = #tpu.pipeline_mode<synchronous>, transform_indices = @transform_6, window_bounds = array<i64: 1, 32>}, {pipeline_mode = #tpu.pipeline_mode<synchronous>, transform_indices = @transform_7, window_bounds = array<i64: 1, 32>}, {pipeline_mode = #tpu.pipeline_mode<synchronous>, transform_indices = @transform_8, window_bounds = array<i64: 1, 32>}, {pipeline_mode = #tpu.pipeline_mode<synchronous>, transform_indices = @transform_9, window_bounds = array<i64: 32, 128>}, {pipeline_mode = #tpu.pipeline_mode<synchronous>, transform_indices = @transform_10, window_bounds = array<i64: 1, 128>}, {pipeline_mode = #tpu.pipeline_mode<synchronous>, transform_indices = @transform_11, window_bounds = array<i64: 128, 32>}, {pipeline_mode = #tpu.pipeline_mode<synchronous>, transform_indices = @transform_12, window_bounds = array<i64: 1, 32>}, {transform_indices = @transform_13, window_bounds = array<i64: 1, 8, 32>}]} {
    %c0 = arith.constant 0 : index
    %c0_0 = arith.constant 0 : index
    %c0_1 = arith.constant 0 : index
    %0 = vector.load %arg1[%c0, %c0_0, %c0_1] : memref<1x8x32xf32, #tpu.memory_space<vmem>>, vector<1x8x32xf32>
    %1 = vector.shape_cast %0 : vector<1x8x32xf32> to vector<8x32xf32>
    %c0_2 = arith.constant 0 : index
    %c0_3 = arith.constant 0 : index
    %2 = vector.load %arg2[%c0_2, %c0_3] : memref<1x32xf32, #tpu.memory_space<vmem>>, vector<1x32xf32>
    %c0_4 = arith.constant 0 : index
    %c0_5 = arith.constant 0 : index
    %3 = vector.load %arg3[%c0_4, %c0_5] : memref<1x32xf32, #tpu.memory_space<vmem>>, vector<1x32xf32>
    %cst = arith.constant dense<0.000000e+00> : vector<8xf32>
    %4 = vector.multi_reduction <add>, %1, %cst [1] : vector<8x32xf32> to vector<8xf32>
    %5 = vector.shape_cast %4 : vector<8xf32> to vector<8x1xf32>
    %cst_6 = arith.constant 3.200000e+01 : f32
    %6 = vector.broadcast %cst_6 : f32 to vector<8x1xf32>
    %7 = arith.divf %5, %6 : vector<8x1xf32>
    %8 = vector.broadcast %7 : vector<8x1xf32> to vector<8x32xf32>
    %9 = arith.subf %1, %8 : vector<8x32xf32>
    %10 = arith.mulf %9, %9 : vector<8x32xf32>
    %cst_7 = arith.constant dense<0.000000e+00> : vector<8xf32>
    %11 = vector.multi_reduction <add>, %10, %cst_7 [1] : vector<8x32xf32> to vector<8xf32>
    %12 = vector.shape_cast %11 : vector<8xf32> to vector<8x1xf32>
    %cst_8 = arith.constant 3.200000e+01 : f32
    %13 = vector.broadcast %cst_8 : f32 to vector<8x1xf32>
    %14 = arith.divf %12, %13 : vector<8x1xf32>
    %15 = vector.broadcast %7 : vector<8x1xf32> to vector<8x32xf32>
    %16 = arith.subf %1, %15 : vector<8x32xf32>
    %cst_9 = arith.constant 9.99999974E-6 : f32
    %17 = vector.broadcast %cst_9 : f32 to vector<8x1xf32>
    %18 = arith.addf %14, %17 : vector<8x1xf32>
    %19 = math.rsqrt %18 : vector<8x1xf32>
    %20 = vector.broadcast %19 : vector<8x1xf32> to vector<8x32xf32>
    %21 = arith.mulf %16, %20 : vector<8x32xf32>
    %22 = vector.broadcast %2 : vector<1x32xf32> to vector<8x32xf32>
    %23 = arith.mulf %21, %22 : vector<8x32xf32>
    %24 = vector.broadcast %3 : vector<1x32xf32> to vector<8x32xf32>
    %25 = arith.addf %23, %24 : vector<8x32xf32>
    %26 = arith.truncf %25 : vector<8x32xf32> to vector<8x32xbf16>
    %c0_10 = arith.constant 0 : index
    %c0_11 = arith.constant 0 : index
    %27 = vector.load %arg4[%c0_10, %c0_11] : memref<32x96xbf16, #tpu.memory_space<vmem>>, vector<32x96xbf16>
    %cst_12 = arith.constant dense<0.000000e+00> : vector<8x96xf32>
    %28 = tpu.matmul %26, %27, %cst_12 {dimension_numbers = #tpu.dot_dimension_numbers<[1], [0], [0], [1], [0, 0, 1, 1], [], []>} : vector<8x32xbf16>, vector<32x96xbf16>, vector<8x96xf32> -> vector<8x96xf32>
    %c0_13 = arith.constant 0 : index
    %c0_14 = arith.constant 0 : index
    %29 = vector.load %arg5[%c0_13, %c0_14] : memref<1x96xf32, #tpu.memory_space<vmem>>, vector<1x96xf32>
    %30 = vector.broadcast %29 : vector<1x96xf32> to vector<8x96xf32>
    %31 = arith.addf %28, %30 : vector<8x96xf32>
    %32 = vector.shape_cast %31 : vector<8x96xf32> to vector<1x8x96xf32>
    %33 = arith.truncf %32 : vector<1x8x96xf32> to vector<1x8x96xbf16>
    %c0_15 = arith.constant 0 : index
    %c0_16 = arith.constant 0 : index
    %c0_17 = arith.constant 0 : index
    %34 = vector.load %arg15[%c0_15, %c0_16, %c0_17] : memref<1x8x96xbf16, #tpu.memory_space<vmem>>, vector<1x8x96xbf16>
    tpu.vector_store %arg15[%c0_15, %c0_16, %c0_17], %33 {strides = array<i32>} : memref<1x8x96xbf16, #tpu.memory_space<vmem>>, vector<1x8x96xbf16>,
    %35 = tpu.iota {dimensions = array<i32: 0>} : vector<8x8xi32>
    %36 = tpu.iota {dimensions = array<i32: 1>} : vector<8x8xi32>
    %37 = arith.cmpi sle, %36, %35 : vector<8x8xi32>
    %cst_18 = arith.constant 0.000000e+00 : f32
    %cst_19 = arith.constant -1.000000e+30 : f32
    %38 = vector.broadcast %cst_18 : f32 to vector<8x8xf32>
    %39 = vector.broadcast %cst_19 : f32 to vector<8x8xf32>
    %40 = arith.select %37, %38, %39 : vector<8x8xi1>, vector<8x8xf32>
    %c0_20 = arith.constant 0 : index
    %c0_21 = arith.constant 0 : index
    %c0_22 = arith.constant 0 : index
    %41 = vector.load %arg15[%c0_20, %c0_21, %c0_22] : memref<1x8x96xbf16, #tpu.memory_space<vmem>>, vector<1x8x32xbf16>
    %42 = vector.shape_cast %41 : vector<1x8x32xbf16> to vector<8x32xbf16>
    %c0_23 = arith.constant 0 : index
    %c0_24 = arith.constant 0 : index
    %c32 = arith.constant 32 : index
    %43 = vector.load %arg15[%c0_23, %c0_24, %c32] : memref<1x8x96xbf16, #tpu.memory_space<vmem>>, vector<1x8x32xbf16>
    %44 = vector.shape_cast %43 : vector<1x8x32xbf16> to vector<8x32xbf16>
    %c0_25 = arith.constant 0 : index
    %c0_26 = arith.constant 0 : index
    %c64 = arith.constant 64 : index
    %45 = vector.load %arg15[%c0_25, %c0_26, %c64] : memref<1x8x96xbf16, #tpu.memory_space<vmem>>, vector<1x8x32xbf16>
    %46 = vector.shape_cast %45 : vector<1x8x32xbf16> to vector<8x32xbf16>
    %47 = vector.extract_strided_slice %42 {offsets = [0, 0], sizes = [8, 8], strides = [1, 1]} : vector<8x32xbf16> to vector<8x8xbf16>
    %48 = vector.extract_strided_slice %44 {offsets = [0, 0], sizes = [8, 8], strides = [1, 1]} : vector<8x32xbf16> to vector<8x8xbf16>
    %49 = vector.extract_strided_slice %46 {offsets = [0, 0], sizes = [8, 8], strides = [1, 1]} : vector<8x32xbf16> to vector<8x8xbf16>
    %cst_27 = arith.constant dense<0.000000e+00> : vector<8x8xf32>
    %50 = tpu.matmul %47, %48, %cst_27 {dimension_numbers = #tpu.dot_dimension_numbers<[1], [1], [0], [0], [0, 0, 1, 0], [], []>} : vector<8x8xbf16>, vector<8x8xbf16>, vector<8x8xf32> -> vector<8x8xf32>
    %51 = arith.addf %50, %40 : vector<8x8xf32>
    %cst_28 = arith.constant dense<0xFF800000> : vector<8xf32>
    %52 = vector.multi_reduction <maximumf>, %51, %cst_28 [1] : vector<8x8xf32> to vector<8xf32>
    %53 = vector.shape_cast %52 : vector<8xf32> to vector<8x1xf32>
    %54 = vector.broadcast %53 : vector<8x1xf32> to vector<8x8xf32>
    %55 = arith.subf %51, %54 : vector<8x8xf32>
    %56 = math.exp %55 : vector<8x8xf32>
    %cst_29 = arith.constant dense<0.000000e+00> : vector<8xf32>
    %57 = vector.multi_reduction <add>, %56, %cst_29 [1] : vector<8x8xf32> to vector<8xf32>
    %58 = vector.shape_cast %57 : vector<8xf32> to vector<8x1xf32>
    %59 = arith.truncf %56 : vector<8x8xf32> to vector<8x8xbf16>
    %cst_30 = arith.constant dense<0.000000e+00> : vector<8x8xf32>
    %60 = tpu.matmul %59, %49, %cst_30 {dimension_numbers = #tpu.dot_dimension_numbers<[1], [0], [0], [1], [0, 0, 1, 1], [], []>} : vector<8x8xbf16>, vector<8x8xbf16>, vector<8x8xf32> -> vector<8x8xf32>
    %61 = tpu.reciprocal %58 {approx = true} : vector<8x1xf32> -> vector<8x1xf32>
    %62 = vector.broadcast %61 : vector<8x1xf32> to vector<8x8xf32>
    %63 = arith.mulf %60, %62 : vector<8x8xf32>
    %64 = arith.truncf %63 : vector<8x8xf32> to vector<8x8xbf16>
    %65 = vector.extract_strided_slice %42 {offsets = [0, 8], sizes = [8, 8], strides = [1, 1]} : vector<8x32xbf16> to vector<8x8xbf16>
    %66 = vector.extract_strided_slice %44 {offsets = [0, 8], sizes = [8, 8], strides = [1, 1]} : vector<8x32xbf16> to vector<8x8xbf16>
    %67 = vector.extract_strided_slice %46 {offsets = [0, 8], sizes = [8, 8], strides = [1, 1]} : vector<8x32xbf16> to vector<8x8xbf16>
    %cst_31 = arith.constant dense<0.000000e+00> : vector<8x8xf32>
    %68 = tpu.matmul %65, %66, %cst_31 {dimension_numbers = #tpu.dot_dimension_numbers<[1], [1], [0], [0], [0, 0, 1, 0], [], []>} : vector<8x8xbf16>, vector<8x8xbf16>, vector<8x8xf32> -> vector<8x8xf32>
    %69 = arith.addf %68, %40 : vector<8x8xf32>
    %cst_32 = arith.constant dense<0xFF800000> : vector<8xf32>
    %70 = vector.multi_reduction <maximumf>, %69, %cst_32 [1] : vector<8x8xf32> to vector<8xf32>
    %71 = vector.shape_cast %70 : vector<8xf32> to vector<8x1xf32>
    %72 = vector.broadcast %71 : vector<8x1xf32> to vector<8x8xf32>
    %73 = arith.subf %69, %72 : vector<8x8xf32>
    %74 = math.exp %73 : vector<8x8xf32>
    %cst_33 = arith.constant dense<0.000000e+00> : vector<8xf32>
    %75 = vector.multi_reduction <add>, %74, %cst_33 [1] : vector<8x8xf32> to vector<8xf32>
    %76 = vector.shape_cast %75 : vector<8xf32> to vector<8x1xf32>
    %77 = arith.truncf %74 : vector<8x8xf32> to vector<8x8xbf16>
    %cst_34 = arith.constant dense<0.000000e+00> : vector<8x8xf32>
    %78 = tpu.matmul %77, %67, %cst_34 {dimension_numbers = #tpu.dot_dimension_numbers<[1], [0], [0], [1], [0, 0, 1, 1], [], []>} : vector<8x8xbf16>, vector<8x8xbf16>, vector<8x8xf32> -> vector<8x8xf32>
    %79 = tpu.reciprocal %76 {approx = true} : vector<8x1xf32> -> vector<8x1xf32>
    %80 = vector.broadcast %79 : vector<8x1xf32> to vector<8x8xf32>
    %81 = arith.mulf %78, %80 : vector<8x8xf32>
    %82 = arith.truncf %81 : vector<8x8xf32> to vector<8x8xbf16>
    %83 = vector.extract_strided_slice %42 {offsets = [0, 16], sizes = [8, 8], strides = [1, 1]} : vector<8x32xbf16> to vector<8x8xbf16>
    %84 = vector.extract_strided_slice %44 {offsets = [0, 16], sizes = [8, 8], strides = [1, 1]} : vector<8x32xbf16> to vector<8x8xbf16>
    %85 = vector.extract_strided_slice %46 {offsets = [0, 16], sizes = [8, 8], strides = [1, 1]} : vector<8x32xbf16> to vector<8x8xbf16>
    %cst_35 = arith.constant dense<0.000000e+00> : vector<8x8xf32>
    %86 = tpu.matmul %83, %84, %cst_35 {dimension_numbers = #tpu.dot_dimension_numbers<[1], [1], [0], [0], [0, 0, 1, 0], [], []>} : vector<8x8xbf16>, vector<8x8xbf16>, vector<8x8xf32> -> vector<8x8xf32>
    %87 = arith.addf %86, %40 : vector<8x8xf32>
    %cst_36 = arith.constant dense<0xFF800000> : vector<8xf32>
    %88 = vector.multi_reduction <maximumf>, %87, %cst_36 [1] : vector<8x8xf32> to vector<8xf32>
    %89 = vector.shape_cast %88 : vector<8xf32> to vector<8x1xf32>
    %90 = vector.broadcast %89 : vector<8x1xf32> to vector<8x8xf32>
    %91 = arith.subf %87, %90 : vector<8x8xf32>
    %92 = math.exp %91 : vector<8x8xf32>
    %cst_37 = arith.constant dense<0.000000e+00> : vector<8xf32>
    %93 = vector.multi_reduction <add>, %92, %cst_37 [1] : vector<8x8xf32> to vector<8xf32>
    %94 = vector.shape_cast %93 : vector<8xf32> to vector<8x1xf32>
    %95 = arith.truncf %92 : vector<8x8xf32> to vector<8x8xbf16>
    %cst_38 = arith.constant dense<0.000000e+00> : vector<8x8xf32>
    %96 = tpu.matmul %95, %85, %cst_38 {dimension_numbers = #tpu.dot_dimension_numbers<[1], [0], [0], [1], [0, 0, 1, 1], [], []>} : vector<8x8xbf16>, vector<8x8xbf16>, vector<8x8xf32> -> vector<8x8xf32>
    %97 = tpu.reciprocal %94 {approx = true} : vector<8x1xf32> -> vector<8x1xf32>
    %98 = vector.broadcast %97 : vector<8x1xf32> to vector<8x8xf32>
    %99 = arith.mulf %96, %98 : vector<8x8xf32>
    %100 = arith.truncf %99 : vector<8x8xf32> to vector<8x8xbf16>
    %101 = vector.extract_strided_slice %42 {offsets = [0, 24], sizes = [8, 8], strides = [1, 1]} : vector<8x32xbf16> to vector<8x8xbf16>
    %102 = vector.extract_strided_slice %44 {offsets = [0, 24], sizes = [8, 8], strides = [1, 1]} : vector<8x32xbf16> to vector<8x8xbf16>
    %103 = vector.extract_strided_slice %46 {offsets = [0, 24], sizes = [8, 8], strides = [1, 1]} : vector<8x32xbf16> to vector<8x8xbf16>
    %cst_39 = arith.constant dense<0.000000e+00> : vector<8x8xf32>
    %104 = tpu.matmul %101, %102, %cst_39 {dimension_numbers = #tpu.dot_dimension_numbers<[1], [1], [0], [0], [0, 0, 1, 0], [], []>} : vector<8x8xbf16>, vector<8x8xbf16>, vector<8x8xf32> -> vector<8x8xf32>
    %105 = arith.addf %104, %40 : vector<8x8xf32>
    %cst_40 = arith.constant dense<0xFF800000> : vector<8xf32>
    %106 = vector.multi_reduction <maximumf>, %105, %cst_40 [1] : vector<8x8xf32> to vector<8xf32>
    %107 = vector.shape_cast %106 : vector<8xf32> to vector<8x1xf32>
    %108 = vector.broadcast %107 : vector<8x1xf32> to vector<8x8xf32>
    %109 = arith.subf %105, %108 : vector<8x8xf32>
    %110 = math.exp %109 : vector<8x8xf32>
    %cst_41 = arith.constant dense<0.000000e+00> : vector<8xf32>
    %111 = vector.multi_reduction <add>, %110, %cst_41 [1] : vector<8x8xf32> to vector<8xf32>
    %112 = vector.shape_cast %111 : vector<8xf32> to vector<8x1xf32>
    %113 = arith.truncf %110 : vector<8x8xf32> to vector<8x8xbf16>
    %cst_42 = arith.constant dense<0.000000e+00> : vector<8x8xf32>
    %114 = tpu.matmul %113, %103, %cst_42 {dimension_numbers = #tpu.dot_dimension_numbers<[1], [0], [0], [1], [0, 0, 1, 1], [], []>} : vector<8x8xbf16>, vector<8x8xbf16>, vector<8x8xf32> -> vector<8x8xf32>
    %115 = tpu.reciprocal %112 {approx = true} : vector<8x1xf32> -> vector<8x1xf32>
    %116 = vector.broadcast %115 : vector<8x1xf32> to vector<8x8xf32>
    %117 = arith.mulf %114, %116 : vector<8x8xf32>
    %118 = arith.truncf %117 : vector<8x8xf32> to vector<8x8xbf16>
    %119 = tpu.concatenate %64, %82, %100, %118 in 1 : vector<8x8xbf16>, vector<8x8xbf16>, vector<8x8xbf16>, vector<8x8xbf16> -> vector<8x32xbf16>
    %c0_43 = arith.constant 0 : index
    %c0_44 = arith.constant 0 : index
    %c0_45 = arith.constant 0 : index
    %120 = vector.load %arg16[%c0_43, %c0_44, %c0_45] : memref<1x8x32xbf16, #tpu.memory_space<vmem>>, vector<1x8x32xbf16>
    %121 = vector.shape_cast %120 : vector<1x8x32xbf16> to vector<8x32xbf16>
    %122 = vector.shape_cast %119 : vector<8x32xbf16> to vector<1x8x32xbf16>
    tpu.vector_store %arg16[%c0_43, %c0_44, %c0_45], %122 {strides = array<i32>} : memref<1x8x32xbf16, #tpu.memory_space<vmem>>, vector<1x8x32xbf16>,
    %c0_46 = arith.constant 0 : index
    %c0_47 = arith.constant 0 : index
    %c0_48 = arith.constant 0 : index
    %123 = vector.load %arg16[%c0_46, %c0_47, %c0_48] : memref<1x8x32xbf16, #tpu.memory_space<vmem>>, vector<1x8x32xbf16>
    %124 = vector.shape_cast %123 : vector<1x8x32xbf16> to vector<8x32xbf16>
    %c0_49 = arith.constant 0 : index
    %c0_50 = arith.constant 0 : index
    %125 = vector.load %arg6[%c0_49, %c0_50] : memref<32x32xbf16, #tpu.memory_space<vmem>>, vector<32x32xbf16>
    %cst_51 = arith.constant dense<0.000000e+00> : vector<8x32xf32>
    %126 = tpu.matmul %124, %125, %cst_51 {dimension_numbers = #tpu.dot_dimension_numbers<[1], [0], [0], [1], [0, 0, 1, 1], [], []>} : vector<8x32xbf16>, vector<32x32xbf16>, vector<8x32xf32> -> vector<8x32xf32>
    %c0_52 = arith.constant 0 : index
    %c0_53 = arith.constant 0 : index
    %127 = vector.load %arg7[%c0_52, %c0_53] : memref<1x32xf32, #tpu.memory_space<vmem>>, vector<1x32xf32>
    %128 = vector.broadcast %127 : vector<1x32xf32> to vector<8x32xf32>
    %129 = arith.addf %126, %128 : vector<8x32xf32>
    %c0_54 = arith.constant 0 : index
    %c0_55 = arith.constant 0 : index
    %c0_56 = arith.constant 0 : index
    %130 = vector.load %arg1[%c0_54, %c0_55, %c0_56] : memref<1x8x32xf32, #tpu.memory_space<vmem>>, vector<1x8x32xf32>
    %131 = vector.shape_cast %130 : vector<1x8x32xf32> to vector<8x32xf32>
    %132 = arith.addf %129, %131 : vector<8x32xf32>
    %c0_57 = arith.constant 0 : index
    %c0_58 = arith.constant 0 : index
    %133 = vector.load %arg8[%c0_57, %c0_58] : memref<1x32xf32, #tpu.memory_space<vmem>>, vector<1x32xf32>
    %c0_59 = arith.constant 0 : index
    %c0_60 = arith.constant 0 : index
    %134 = vector.load %arg9[%c0_59, %c0_60] : memref<1x32xf32, #tpu.memory_space<vmem>>, vector<1x32xf32>
    %cst_61 = arith.constant dense<0.000000e+00> : vector<8xf32>
    %135 = vector.multi_reduction <add>, %132, %cst_61 [1] : vector<8x32xf32> to vector<8xf32>
    %136 = vector.shape_cast %135 : vector<8xf32> to vector<8x1xf32>
    %cst_62 = arith.constant 3.200000e+01 : f32
    %137 = vector.broadcast %cst_62 : f32 to vector<8x1xf32>
    %138 = arith.divf %136, %137 : vector<8x1xf32>
    %139 = vector.broadcast %138 : vector<8x1xf32> to vector<8x32xf32>
    %140 = arith.subf %132, %139 : vector<8x32xf32>
    %141 = arith.mulf %140, %140 : vector<8x32xf32>
    %cst_63 = arith.constant dense<0.000000e+00> : vector<8xf32>
    %142 = vector.multi_reduction <add>, %141, %cst_63 [1] : vector<8x32xf32> to vector<8xf32>
    %143 = vector.shape_cast %142 : vector<8xf32> to vector<8x1xf32>
    %cst_64 = arith.constant 3.200000e+01 : f32
    %144 = vector.broadcast %cst_64 : f32 to vector<8x1xf32>
    %145 = arith.divf %143, %144 : vector<8x1xf32>
    %146 = vector.broadcast %138 : vector<8x1xf32> to vector<8x32xf32>
    %147 = arith.subf %132, %146 : vector<8x32xf32>
    %cst_65 = arith.constant 9.99999974E-6 : f32
    %148 = vector.broadcast %cst_65 : f32 to vector<8x1xf32>
    %149 = arith.addf %145, %148 : vector<8x1xf32>
    %150 = math.rsqrt %149 : vector<8x1xf32>
    %151 = vector.broadcast %150 : vector<8x1xf32> to vector<8x32xf32>
    %152 = arith.mulf %147, %151 : vector<8x32xf32>
    %153 = vector.broadcast %133 : vector<1x32xf32> to vector<8x32xf32>
    %154 = arith.mulf %152, %153 : vector<8x32xf32>
    %155 = vector.broadcast %134 : vector<1x32xf32> to vector<8x32xf32>
    %156 = arith.addf %154, %155 : vector<8x32xf32>
    %157 = arith.truncf %156 : vector<8x32xf32> to vector<8x32xbf16>
    %158 = vector.shape_cast %157 : vector<8x32xbf16> to vector<1x8x32xbf16>
    %c0_66 = arith.constant 0 : index
    %c0_67 = arith.constant 0 : index
    %c0_68 = arith.constant 0 : index
    %159 = vector.load %arg16[%c0_66, %c0_67, %c0_68] : memref<1x8x32xbf16, #tpu.memory_space<vmem>>, vector<1x8x32xbf16>
    tpu.vector_store %arg16[%c0_66, %c0_67, %c0_68], %158 {strides = array<i32>} : memref<1x8x32xbf16, #tpu.memory_space<vmem>>, vector<1x8x32xbf16>,
    %c0_69 = arith.constant 0 : index
    %c0_70 = arith.constant 0 : index
    %160 = vector.load %arg13[%c0_69, %c0_70] : memref<1x32xf32, #tpu.memory_space<vmem>>, vector<1x32xf32>
    %161 = vector.broadcast %160 : vector<1x32xf32> to vector<8x32xf32>
    %162 = arith.addf %132, %161 : vector<8x32xf32>
    %c0_71 = arith.constant 0 : index
    %c0_72 = arith.constant 0 : index
    %163 = vector.load %arg17[%c0_71, %c0_72] : memref<8x32xf32, #tpu.memory_space<vmem>>, vector<8x32xf32>
    tpu.vector_store %arg17[%c0_71, %c0_72], %162 {strides = array<i32>} : memref<8x32xf32, #tpu.memory_space<vmem>>, vector<8x32xf32>,
    %c0_73 = arith.constant 0 : index
    %c0_74 = arith.constant 0 : index
    %c0_75 = arith.constant 0 : index
    %164 = vector.load %arg16[%c0_73, %c0_74, %c0_75] : memref<1x8x32xbf16, #tpu.memory_space<vmem>>, vector<1x8x32xbf16>
    %165 = vector.shape_cast %164 : vector<1x8x32xbf16> to vector<8x32xbf16>
    %c0_76 = arith.constant 0 : index
    %c0_77 = arith.constant 0 : index
    %166 = vector.load %arg10[%c0_76, %c0_77] : memref<32x128xbf16, #tpu.memory_space<vmem>>, vector<32x128xbf16>
    %cst_78 = arith.constant dense<0.000000e+00> : vector<8x128xf32>
    %167 = tpu.matmul %165, %166, %cst_78 {dimension_numbers = #tpu.dot_dimension_numbers<[1], [0], [0], [1], [0, 0, 1, 1], [], []>} : vector<8x32xbf16>, vector<32x128xbf16>, vector<8x128xf32> -> vector<8x128xf32>
    %c0_79 = arith.constant 0 : index
    %c0_80 = arith.constant 0 : index
    %168 = vector.load %arg11[%c0_79, %c0_80] : memref<1x128xf32, #tpu.memory_space<vmem>>, vector<1x128xf32>
    %169 = vector.broadcast %168 : vector<1x128xf32> to vector<8x128xf32>
    %170 = arith.addf %167, %169 : vector<8x128xf32>
    %cst_81 = arith.constant 1.702000e+00 : f32
    %171 = vector.broadcast %cst_81 : f32 to vector<8x128xf32>
    %172 = arith.mulf %171, %170 : vector<8x128xf32>
    %173 = arith.negf %172 : vector<8x128xf32>
    %174 = math.exp %173 : vector<8x128xf32>
    %cst_82 = arith.constant 1.000000e+00 : f32
    %175 = vector.broadcast %cst_82 : f32 to vector<8x128xf32>
    %176 = arith.addf %175, %174 : vector<8x128xf32>
    %177 = arith.divf %175, %176 : vector<8x128xf32>
    %178 = arith.mulf %170, %177 : vector<8x128xf32>
    %c0_83 = arith.constant 0 : index
    %c0_84 = arith.constant 0 : index
    %179 = vector.load %arg17[%c0_83, %c0_84] : memref<8x32xf32, #tpu.memory_space<vmem>>, vector<8x32xf32>
    %180 = arith.truncf %178 : vector<8x128xf32> to vector<8x128xbf16>
    %c0_85 = arith.constant 0 : index
    %c0_86 = arith.constant 0 : index
    %181 = vector.load %arg12[%c0_85, %c0_86] : memref<128x32xbf16, #tpu.memory_space<vmem>>, vector<128x32xbf16>
    %cst_87 = arith.constant dense<0.000000e+00> : vector<8x32xf32>
    %182 = tpu.matmul %180, %181, %cst_87 {dimension_numbers = #tpu.dot_dimension_numbers<[1], [0], [0], [1], [0, 0, 1, 1], [], []>} : vector<8x128xbf16>, vector<128x32xbf16>, vector<8x32xf32> -> vector<8x32xf32>
    %183 = arith.addf %179, %182 : vector<8x32xf32>
    %c0_88 = arith.constant 0 : index
    %c0_89 = arith.constant 0 : index
    %184 = vector.load %arg17[%c0_88, %c0_89] : memref<8x32xf32, #tpu.memory_space<vmem>>, vector<8x32xf32>
    tpu.vector_store %arg17[%c0_88, %c0_89], %183 {strides = array<i32>} : memref<8x32xf32, #tpu.memory_space<vmem>>, vector<8x32xf32>,
    %c0_90 = arith.constant 0 : index
    %c0_91 = arith.constant 0 : index
    %185 = vector.load %arg17[%c0_90, %c0_91] : memref<8x32xf32, #tpu.memory_space<vmem>>, vector<8x32xf32>
    %186 = vector.shape_cast %185 : vector<8x32xf32> to vector<1x8x32xf32>
    %c0_92 = arith.constant 0 : index
    %c0_93 = arith.constant 0 : index
    %c0_94 = arith.constant 0 : index
    %187 = vector.load %arg14[%c0_92, %c0_93, %c0_94] : memref<1x8x32xf32, #tpu.memory_space<vmem>>, vector<1x8x32xf32>
    tpu.vector_store %arg14[%c0_92, %c0_93, %c0_94], %186 {strides = array<i32>} : memref<1x8x32xf32, #tpu.memory_space<vmem>>, vector<1x8x32xf32>,
    return
  }
  func.func @transform_0(%arg0: i32) -> (i32, i32, i32) {
    %c0_i32 = arith.constant 0 : i32
    %c0_i32_0 = arith.constant 0 : i32
    %c0_i32_1 = arith.constant 0 : i32
    return %arg0, %c0_i32, %c0_i32_0 : i32, i32, i32
  }
  func.func @transform_1(%arg0: i32) -> (i32, i32) {
    %c0_i32 = arith.constant 0 : i32
    %c0_i32_0 = arith.constant 0 : i32
    %c0_i32_1 = arith.constant 0 : i32
    return %c0_i32, %c0_i32_0 : i32, i32
  }
  func.func @transform_2(%arg0: i32) -> (i32, i32) {
    %c0_i32 = arith.constant 0 : i32
    %c0_i32_0 = arith.constant 0 : i32
    %c0_i32_1 = arith.constant 0 : i32
    return %c0_i32, %c0_i32_0 : i32, i32
  }
  func.func @transform_3(%arg0: i32) -> (i32, i32) {
    %c0_i32 = arith.constant 0 : i32
    %c0_i32_0 = arith.constant 0 : i32
    %c0_i32_1 = arith.constant 0 : i32
    return %c0_i32, %c0_i32_0 : i32, i32
  }
  func.func @transform_4(%arg0: i32) -> (i32, i32) {
    %c0_i32 = arith.constant 0 : i32
    %c0_i32_0 = arith.constant 0 : i32
    %c0_i32_1 = arith.constant 0 : i32
    return %c0_i32, %c0_i32_0 : i32, i32
  }
  func.func @transform_5(%arg0: i32) -> (i32, i32) {
    %c0_i32 = arith.constant 0 : i32
    %c0_i32_0 = arith.constant 0 : i32
    %c0_i32_1 = arith.constant 0 : i32
    return %c0_i32, %c0_i32_0 : i32, i32
  }
  func.func @transform_6(%arg0: i32) -> (i32, i32) {
    %c0_i32 = arith.constant 0 : i32
    %c0_i32_0 = arith.constant 0 : i32
    %c0_i32_1 = arith.constant 0 : i32
    return %c0_i32, %c0_i32_0 : i32, i32
  }
  func.func @transform_7(%arg0: i32) -> (i32, i32) {
    %c0_i32 = arith.constant 0 : i32
    %c0_i32_0 = arith.constant 0 : i32
    %c0_i32_1 = arith.constant 0 : i32
    return %c0_i32, %c0_i32_0 : i32, i32
  }
  func.func @transform_8(%arg0: i32) -> (i32, i32) {
    %c0_i32 = arith.constant 0 : i32
    %c0_i32_0 = arith.constant 0 : i32
    %c0_i32_1 = arith.constant 0 : i32
    return %c0_i32, %c0_i32_0 : i32, i32
  }
  func.func @transform_9(%arg0: i32) -> (i32, i32) {
    %c0_i32 = arith.constant 0 : i32
    %c0_i32_0 = arith.constant 0 : i32
    %c0_i32_1 = arith.constant 0 : i32
    return %c0_i32, %c0_i32_0 : i32, i32
  }
  func.func @transform_10(%arg0: i32) -> (i32, i32) {
    %c0_i32 = arith.constant 0 : i32
    %c0_i32_0 = arith.constant 0 : i32
    %c0_i32_1 = arith.constant 0 : i32
    return %c0_i32, %c0_i32_0 : i32, i32
  }
  func.func @transform_11(%arg0: i32) -> (i32, i32) {
    %c0_i32 = arith.constant 0 : i32
    %c0_i32_0 = arith.constant 0 : i32
    %c0_i32_1 = arith.constant 0 : i32
    return %c0_i32, %c0_i32_0 : i32, i32
  }
  func.func @transform_12(%arg0: i32) -> (i32, i32) {
    %c0_i32 = arith.constant 0 : i32
    %c0_i32_0 = arith.constant 0 : i32
    %c0_i32_1 = arith.constant 0 : i32
    return %c0_i32, %c0_i32_0 : i32, i32
  }
  func.func @transform_13(%arg0: i32) -> (i32, i32, i32) {
    %c0_i32 = arith.constant 0 : i32
    %c0_i32_0 = arith.constant 0 : i32
    %c0_i32_1 = arith.constant 0 : i32
    return %arg0, %c0_i32, %c0_i32_0 : i32, i32, i32
  }
}

</mosaic_0001>

<llo_original>
// kernel: tpu_custom_call.1
$region0: #{tpu_custom_call.1}
  #allocation0 [shape = 'u32[]', space=smem, size = 0x4, offset = 0x4, fixed_abs, tag = 'smem constant byte address 0x4 - core index']
  #allocation1 [shape = 'u32[144,128]{1,0:T(1,128)}', space=vmem, size = 0x12000, scoped, tag = 'internal scratch']
  #allocation2 [shape = 'bf16[1,8,96]{2,1,0:T(8,128)(2,1)}', space=vmem, size = 0x800, scoped, tag = 'scratch operand']
  #allocation3 [shape = 'bf16[1,8,32]{2,1,0:T(8,128)(2,1)}', space=vmem, size = 0x800, scoped, tag = 'scratch operand']
  #allocation4 [shape = 'f32[8,32]{1,0:T(8,128)}', space=vmem, size = 0x1000, scoped, tag = 'scratch operand']
  %s0 = inlined_call_operand.vmem [shape: f32[2,8,32], index: 0, kind: input, shape index: {}]
  %s1 = inlined_call_operand.vmem [shape: f32[1,32], index: 1, kind: input, shape index: {}]
  %s2 = inlined_call_operand.vmem [shape: f32[1,32], index: 2, kind: input, shape index: {}]
  %s3 = inlined_call_operand.vmem [shape: bf16[32,96], index: 3, kind: input, shape index: {}]
  %s4 = inlined_call_operand.vmem [shape: f32[1,96], index: 4, kind: input, shape index: {}]
  %s5 = inlined_call_operand.vmem [shape: bf16[32,32], index: 5, kind: input, shape index: {}]
  %s6 = inlined_call_operand.vmem [shape: f32[1,32], index: 6, kind: input, shape index: {}]
  %s7 = inlined_call_operand.vmem [shape: f32[1,32], index: 7, kind: input, shape index: {}]
  %s8 = inlined_call_operand.vmem [shape: f32[1,32], index: 8, kind: input, shape index: {}]
  %s9 = inlined_call_operand.vmem [shape: bf16[32,128], index: 9, kind: input, shape index: {}]
  %s10 = inlined_call_operand.vmem [shape: f32[1,128], index: 10, kind: input, shape index: {}]
  %s11 = inlined_call_operand.vmem [shape: bf16[128,32], index: 11, kind: input, shape index: {}]
  %s12 = inlined_call_operand.vmem [shape: f32[1,32], index: 12, kind: input, shape index: {}]
  %s13 = inlined_call_operand.hbm [shape: f32[2,8,32], index: 13, kind: output, shape index: {}]
  %s14 = sld [smem:[#allocation0]]
  $region85: #{tpu_custom_call.1} parent=0
    _
  %s16 = ssub.s32 1, %s14
  %s17 = scalar_select 0, %s16, %s14
  $region1: #{tpu_custom_call.1} parent=0
    #allocation5 [shape = 'u8[8192]{0}', space=vmem, size = 0x2000, scoped, tag = 'output window, operand 0']
    #allocation6 [shape = 's32[2]{0}', space=sflag, size = 0x8, scoped, tag = 'scoped memory for tpu_custom_call.1']
    %18 = vsyncpa [#allocation6], 0
    %s19 = scalar_lea.sflag [#allocation6], 1
    %20 = vsyncpa %s19, 0
    loop: start=0, step=1, limit=4
    $region2: #{tpu_custom_call.1} parent=1 // loop_pre_header
      _
    $region3: #{tpu_custom_call.1} parent=1 // loop_header
      %s22 = sphi 0, %s26
      %p23 = scmp.ge.s32.totalorder %s22, 4
      %s32 = sphi 0, %s34
      %s35 = sphi 0, %s32
      %s36 = sphi 0, %s35
      %s52 = sphi 0, %s36
      %s56 = sphi 0, %s56
      %s58 = sphi 0, %s56
      %s59 = sphi 0, %s58
      %s73 = sphi 0, %s59
      %s77 = sphi 0, %s77
      %s79 = sphi 0, %s77
      %s80 = sphi 0, %s79
      %s94 = sphi 0, %s80
      %s98 = sphi 0, %s98
      %s100 = sphi 0, %s98
      %s101 = sphi 0, %s100
      %s115 = sphi 0, %s101
      %s119 = sphi 0, %s119
      %s121 = sphi 0, %s119
      %s122 = sphi 0, %s121
      %s136 = sphi 0, %s122
      %s140 = sphi 0, %s140
      %s142 = sphi 0, %s140
      %s143 = sphi 0, %s142
      %s157 = sphi 0, %s143
      %s161 = sphi 0, %s161
      %s163 = sphi 0, %s161
      %s164 = sphi 0, %s163
      %s178 = sphi 0, %s164
      %s182 = sphi 0, %s182
      %s184 = sphi 0, %s182
      %s185 = sphi 0, %s184
      %s199 = sphi 0, %s185
      %s203 = sphi 0, %s203
      %s205 = sphi 0, %s203
      %s206 = sphi 0, %s205
      %s220 = sphi 0, %s206
      %s224 = sphi 0, %s224
      %s226 = sphi 0, %s224
      %s227 = sphi 0, %s226
      %s241 = sphi 0, %s227
      %s245 = sphi 0, %s245
      %s247 = sphi 0, %s245
      %s248 = sphi 0, %s247
      %s262 = sphi 0, %s248
      %s266 = sphi 0, %s266
      %s268 = sphi 0, %s266
      %s269 = sphi 0, %s268
      %s283 = sphi 0, %s269
      %s287 = sphi 0, %s287
      %s289 = sphi 0, %s287
      %s290 = sphi 0, %s289
      %s304 = sphi 0, %s290
      %s310 = sphi 0, %s312
      %s313 = sphi 0, %s310
      %s314 = sphi 0, %s313
      %s330 = sphi 0, %s314
    $region4: #{tpu_custom_call.1} parent=1 // loop_header_branch
      %25 = sbr.rel (%p23) target = $region8
    $region5: #{tpu_custom_call.1} parent=1 // loop_body
      %s27 = ssub.s32 %s22, 1
      %s28 = ssub.s32 %s22, 2
      %s29 = sadd.s32 %s22, 1
      %s30 = ssub.s32 %s22, %s29
      %p31 = scmp.eq.s32.totalorder %s30, 0
      %s33 = sadd.s32 %s32, 1
      %s34 = scalar_select %p31, %s32, %s33
      %p37 = pneg %p31
      %p38 = scmp.eq.s32.totalorder %s22, 1
      %p39 = por %p37, %p38
      %p40 = scmp.ne.s32.totalorder %s32, %s35
      %p41 = scmp.eq.s32.totalorder %s22, 0
      %p42 = por %p40, %p41
      %p43 = scmp.ne.s32.totalorder %s32, %s35
      %p44 = scmp.eq.s32.totalorder %s27, 1
      %p45 = por %p43, %p44
      %p46 = scmp.ne.s32.totalorder %s35, %s36
      %p47 = scmp.eq.s32.totalorder %s27, 0
      %p48 = por %p46, %p47
      %p49 = scmp.ne.s32.totalorder %s35, %s36
      %p50 = scmp.eq.s32.totalorder %s28, 1
      %p51 = por %p49, %p50
      %p53 = scmp.ne.s32.totalorder %s36, %s52
      %p54 = scmp.eq.s32.totalorder %s28, 0
      %p55 = por %p53, %p54
      %s57 = sadd.s32 %s56, 1
      %p60 = scmp.eq.s32.totalorder %s22, 1
      %p61 = scmp.ne.s32.totalorder %s56, %s58
      %p62 = scmp.eq.s32.totalorder %s22, 0
      %p63 = por %p61, %p62
      %p64 = scmp.ne.s32.totalorder %s56, %s58
      %p65 = scmp.eq.s32.totalorder %s27, 1
      %p66 = por %p64, %p65
      %p67 = scmp.ne.s32.totalorder %s58, %s59
      %p68 = scmp.eq.s32.totalorder %s27, 0
      %p69 = por %p67, %p68
      %p70 = scmp.ne.s32.totalorder %s58, %s59
      %p71 = scmp.eq.s32.totalorder %s28, 1
      %p72 = por %p70, %p71
      %p74 = scmp.ne.s32.totalorder %s59, %s73
      %p75 = scmp.eq.s32.totalorder %s28, 0
      %p76 = por %p74, %p75
      %s78 = sadd.s32 %s77, 1
      %p81 = scmp.eq.s32.totalorder %s22, 1
      %p82 = scmp.ne.s32.totalorder %s77, %s79
      %p83 = scmp.eq.s32.totalorder %s22, 0
      %p84 = por %p82, %p83
      %p85 = scmp.ne.s32.totalorder %s77, %s79
      %p86 = scmp.eq.s32.totalorder %s27, 1
      %p87 = por %p85, %p86
      %p88 = scmp.ne.s32.totalorder %s79, %s80
      %p89 = scmp.eq.s32.totalorder %s27, 0
      %p90 = por %p88, %p89
      %p91 = scmp.ne.s32.totalorder %s79, %s80
      %p92 = scmp.eq.s32.totalorder %s28, 1
      %p93 = por %p91, %p92
      %p95 = scmp.ne.s32.totalorder %s80, %s94
      %p96 = scmp.eq.s32.totalorder %s28, 0
      %p97 = por %p95, %p96
      %s99 = sadd.s32 %s98, 1
      %p102 = scmp.eq.s32.totalorder %s22, 1
      %p103 = scmp.ne.s32.totalorder %s98, %s100
      %p104 = scmp.eq.s32.totalorder %s22, 0
      %p105 = por %p103, %p104
      %p106 = scmp.ne.s32.totalorder %s98, %s100
      %p107 = scmp.eq.s32.totalorder %s27, 1
      %p108 = por %p106, %p107
      %p109 = scmp.ne.s32.totalorder %s100, %s101
      %p110 = scmp.eq.s32.totalorder %s27, 0
      %p111 = por %p109, %p110
      %p112 = scmp.ne.s32.totalorder %s100, %s101
      %p113 = scmp.eq.s32.totalorder %s28, 1
      %p114 = por %p112, %p113
      %p116 = scmp.ne.s32.totalorder %s101, %s115
      %p117 = scmp.eq.s32.totalorder %s28, 0
      %p118 = por %p116, %p117
      %s120 = sadd.s32 %s119, 1
      %p123 = scmp.eq.s32.totalorder %s22, 1
      %p124 = scmp.ne.s32.totalorder %s119, %s121
      %p125 = scmp.eq.s32.totalorder %s22, 0
      %p126 = por %p124, %p125
      %p127 = scmp.ne.s32.totalorder %s119, %s121
      %p128 = scmp.eq.s32.totalorder %s27, 1
      %p129 = por %p127, %p128
      %p130 = scmp.ne.s32.totalorder %s121, %s122
      %p131 = scmp.eq.s32.totalorder %s27, 0
      %p132 = por %p130, %p131
      %p133 = scmp.ne.s32.totalorder %s121, %s122
      %p134 = scmp.eq.s32.totalorder %s28, 1
      %p135 = por %p133, %p134
      %p137 = scmp.ne.s32.totalorder %s122, %s136
      %p138 = scmp.eq.s32.totalorder %s28, 0
      %p139 = por %p137, %p138
      %s141 = sadd.s32 %s140, 1
      %p144 = scmp.eq.s32.totalorder %s22, 1
      %p145 = scmp.ne.s32.totalorder %s140, %s142
      %p146 = scmp.eq.s32.totalorder %s22, 0
      %p147 = por %p145, %p146
      %p148 = scmp.ne.s32.totalorder %s140, %s142
      %p149 = scmp.eq.s32.totalorder %s27, 1
      %p150 = por %p148, %p149
      %p151 = scmp.ne.s32.totalorder %s142, %s143
      %p152 = scmp.eq.s32.totalorder %s27, 0
      %p153 = por %p151, %p152
      %p154 = scmp.ne.s32.totalorder %s142, %s143
      %p155 = scmp.eq.s32.totalorder %s28, 1
      %p156 = por %p154, %p155
      %p158 = scmp.ne.s32.totalorder %s143, %s157
      %p159 = scmp.eq.s32.totalorder %s28, 0
      %p160 = por %p158, %p159
      %s162 = sadd.s32 %s161, 1
      %p165 = scmp.eq.s32.totalorder %s22, 1
      %p166 = scmp.ne.s32.totalorder %s161, %s163
      %p167 = scmp.eq.s32.totalorder %s22, 0
      %p168 = por %p166, %p167
      %p169 = scmp.ne.s32.totalorder %s161, %s163
      %p170 = scmp.eq.s32.totalorder %s27, 1
      %p171 = por %p169, %p170
      %p172 = scmp.ne.s32.totalorder %s163, %s164
      %p173 = scmp.eq.s32.totalorder %s27, 0
      %p174 = por %p172, %p173
      %p175 = scmp.ne.s32.totalorder %s163, %s164
      %p176 = scmp.eq.s32.totalorder %s28, 1
      %p177 = por %p175, %p176
      %p179 = scmp.ne.s32.totalorder %s164, %s178
      %p180 = scmp.eq.s32.totalorder %s28, 0
      %p181 = por %p179, %p180
      %s183 = sadd.s32 %s182, 1
      %p186 = scmp.eq.s32.totalorder %s22, 1
      %p187 = scmp.ne.s32.totalorder %s182, %s184
      %p188 = scmp.eq.s32.totalorder %s22, 0
      %p189 = por %p187, %p188
      %p190 = scmp.ne.s32.totalorder %s182, %s184
      %p191 = scmp.eq.s32.totalorder %s27, 1
      %p192 = por %p190, %p191
      %p193 = scmp.ne.s32.totalorder %s184, %s185
      %p194 = scmp.eq.s32.totalorder %s27, 0
      %p195 = por %p193, %p194
      %p196 = scmp.ne.s32.totalorder %s184, %s185
      %p197 = scmp.eq.s32.totalorder %s28, 1
      %p198 = por %p196, %p197
      %p200 = scmp.ne.s32.totalorder %s185, %s199
      %p201 = scmp.eq.s32.totalorder %s28, 0
      %p202 = por %p200, %p201
      %s204 = sadd.s32 %s203, 1
      %p207 = scmp.eq.s32.totalorder %s22, 1
      %p208 = scmp.ne.s32.totalorder %s203, %s205
      %p209 = scmp.eq.s32.totalorder %s22, 0
      %p210 = por %p208, %p209
      %p211 = scmp.ne.s32.totalorder %s203, %s205
      %p212 = scmp.eq.s32.totalorder %s27, 1
      %p213 = por %p211, %p212
      %p214 = scmp.ne.s32.totalorder %s205, %s206
      %p215 = scmp.eq.s32.totalorder %s27, 0
      %p216 = por %p214, %p215
      %p217 = scmp.ne.s32.totalorder %s205, %s206
      %p218 = scmp.eq.s32.totalorder %s28, 1
      %p219 = por %p217, %p218
      %p221 = scmp.ne.s32.totalorder %s206, %s220
      %p222 = scmp.eq.s32.totalorder %s28, 0
      %p223 = por %p221, %p222
      %s225 = sadd.s32 %s224, 1
      %p228 = scmp.eq.s32.totalorder %s22, 1
      %p229 = scmp.ne.s32.totalorder %s224, %s226
      %p230 = scmp.eq.s32.totalorder %s22, 0
      %p231 = por %p229, %p230
      %p232 = scmp.ne.s32.totalorder %s224, %s226
      %p233 = scmp.eq.s32.totalorder %s27, 1
      %p234 = por %p232, %p233
      %p235 = scmp.ne.s32.totalorder %s226, %s227
      %p236 = scmp.eq.s32.totalorder %s27, 0
      %p237 = por %p235, %p236
      %p238 = scmp.ne.s32.totalorder %s226, %s227
      %p239 = scmp.eq.s32.totalorder %s28, 1
      %p240 = por %p238, %p239
      %p242 = scmp.ne.s32.totalorder %s227, %s241
      %p243 = scmp.eq.s32.totalorder %s28, 0
      %p244 = por %p242, %p243
      %s246 = sadd.s32 %s245, 1
      %p249 = scmp.eq.s32.totalorder %s22, 1
      %p250 = scmp.ne.s32.totalorder %s245, %s247
      %p251 = scmp.eq.s32.totalorder %s22, 0
      %p252 = por %p250, %p251
      %p253 = scmp.ne.s32.totalorder %s245, %s247
      %p254 = scmp.eq.s32.totalorder %s27, 1
      %p255 = por %p253, %p254
      %p256 = scmp.ne.s32.totalorder %s247, %s248
      %p257 = scmp.eq.s32.totalorder %s27, 0
      %p258 = por %p256, %p257
      %p259 = scmp.ne.s32.totalorder %s247, %s248
      %p260 = scmp.eq.s32.totalorder %s28, 1
      %p261 = por %p259, %p260
      %p263 = scmp.ne.s32.totalorder %s248, %s262
      %p264 = scmp.eq.s32.totalorder %s28, 0
      %p265 = por %p263, %p264
      %s267 = sadd.s32 %s266, 1
      %p270 = scmp.eq.s32.totalorder %s22, 1
      %p271 = scmp.ne.s32.totalorder %s266, %s268
      %p272 = scmp.eq.s32.totalorder %s22, 0
      %p273 = por %p271, %p272
      %p274 = scmp.ne.s32.totalorder %s266, %s268
      %p275 = scmp.eq.s32.totalorder %s27, 1
      %p276 = por %p274, %p275
      %p277 = scmp.ne.s32.totalorder %s268, %s269
      %p278 = scmp.eq.s32.totalorder %s27, 0
      %p279 = por %p277, %p278
      %p280 = scmp.ne.s32.totalorder %s268, %s269
      %p281 = scmp.eq.s32.totalorder %s28, 1
      %p282 = por %p280, %p281
      %p284 = scmp.ne.s32.totalorder %s269, %s283
      %p285 = scmp.eq.s32.totalorder %s28, 0
      %p286 = por %p284, %p285
      %s288 = sadd.s32 %s287, 1
      %p291 = scmp.eq.s32.totalorder %s22, 1
      %p292 = scmp.ne.s32.totalorder %s287, %s289
      %p293 = scmp.eq.s32.totalorder %s22, 0
      %p294 = por %p292, %p293
      %p295 = scmp.ne.s32.totalorder %s287, %s289
      %p296 = scmp.eq.s32.totalorder %s27, 1
      %p297 = por %p295, %p296
      %p298 = scmp.ne.s32.totalorder %s289, %s290
      %p299 = scmp.eq.s32.totalorder %s27, 0
      %p300 = por %p298, %p299
      %p301 = scmp.ne.s32.totalorder %s289, %s290
      %p302 = scmp.eq.s32.totalorder %s28, 1
      %p303 = por %p301, %p302
      %p305 = scmp.ne.s32.totalorder %s290, %s304
      %p306 = scmp.eq.s32.totalorder %s28, 0
      %p307 = por %p305, %p306
      %s308 = ssub.s32 %s22, %s29
      %p309 = scmp.eq.s32.totalorder %s308, 0
      %s311 = sadd.s32 %s310, 1
      %s312 = scalar_select %p309, %s310, %s311
      %p315 = pneg %p309
      %p316 = scmp.eq.s32.totalorder %s22, 1
      %p317 = por %p315, %p316
      %p318 = scmp.ne.s32.totalorder %s310, %s313
      %p319 = scmp.eq.s32.totalorder %s22, 0
      %p320 = por %p318, %p319
      %p321 = scmp.ne.s32.totalorder %s310, %s313
      %p322 = scmp.eq.s32.totalorder %s27, 1
      %p323 = por %p321, %p322
      %p324 = scmp.ne.s32.totalorder %s313, %s314
      %p325 = scmp.eq.s32.totalorder %s27, 0
      %p326 = por %p324, %p325
      %p327 = scmp.ne.s32.totalorder %s313, %s314
      %p328 = scmp.eq.s32.totalorder %s28, 1
      %p329 = por %p327, %p328
      %p331 = scmp.ne.s32.totalorder %s314, %s330
      %p332 = scmp.eq.s32.totalorder %s28, 0
      %p333 = por %p331, %p332
      %p334 = scmp.le.s32.totalorder 1, %s22
      %p335 = scmp.lt.s32.totalorder %s22, 3
      %p336 = pnand %p334, %p335
      %p337 = pneg %p336
      // Predicated region
      $region9: #{tpu_custom_call.1} parent=5 // pred_check
        _
      $region10: #{tpu_custom_call.1} parent=5 // pred_check_branch
        %339 = sbr.rel (%p336) target = $region12
      $region11: #{tpu_custom_call.1} parent=5 // pred_region
        %s340 = ssub.s32 %s22, 1
        // Predicated region
        $region13: #{tpu_custom_call.1} parent=11 // pred_check
          %p341 = pneg %p69
        $region14: #{tpu_custom_call.1} parent=11 // pred_check_branch
          %343 = sbr.rel (%p341) target = $region16
        $region15: #{tpu_custom_call.1} parent=11 // pred_region
          _
        $region16: #{tpu_custom_call.1} parent=11 // pred_fallthru
          _
        // Predicated region
        $region17: #{tpu_custom_call.1} parent=11 // pred_check
          %p344 = pneg %p90
        $region18: #{tpu_custom_call.1} parent=11 // pred_check_branch
          %346 = sbr.rel (%p344) target = $region20
        $region19: #{tpu_custom_call.1} parent=11 // pred_region
          _
        $region20: #{tpu_custom_call.1} parent=11 // pred_fallthru
          _
        // Predicated region
        $region21: #{tpu_custom_call.1} parent=11 // pred_check
          %p347 = pneg %p111
        $region22: #{tpu_custom_call.1} parent=11 // pred_check_branch
          %349 = sbr.rel (%p347) target = $region24
        $region23: #{tpu_custom_call.1} parent=11 // pred_region
          _
        $region24: #{tpu_custom_call.1} parent=11 // pred_fallthru
          _
        // Predicated region
        $region25: #{tpu_custom_call.1} parent=11 // pred_check
          %p350 = pneg %p132
        $region26: #{tpu_custom_call.1} parent=11 // pred_check_branch
          %352 = sbr.rel (%p350) target = $region28
        $region27: #{tpu_custom_call.1} parent=11 // pred_region
          _
        $region28: #{tpu_custom_call.1} parent=11 // pred_fallthru
          _
        // Predicated region
        $region29: #{tpu_custom_call.1} parent=11 // pred_check
          %p353 = pneg %p153
        $region30: #{tpu_custom_call.1} parent=11 // pred_check_branch
          %355 = sbr.rel (%p353) target = $region32
        $region31: #{tpu_custom_call.1} parent=11 // pred_region
          _
        $region32: #{tpu_custom_call.1} parent=11 // pred_fallthru
          _
        // Predicated region
        $region33: #{tpu_custom_call.1} parent=11 // pred_check
          %p356 = pneg %p174
        $region34: #{tpu_custom_call.1} parent=11 // pred_check_branch
          %358 = sbr.rel (%p356) target = $region36
        $region35: #{tpu_custom_call.1} parent=11 // pred_region
          _
        $region36: #{tpu_custom_call.1} parent=11 // pred_fallthru
          _
        // Predicated region
        $region37: #{tpu_custom_call.1} parent=11 // pred_check
          %p359 = pneg %p195
        $region38: #{tpu_custom_call.1} parent=11 // pred_check_branch
          %361 = sbr.rel (%p359) target = $region40
        $region39: #{tpu_custom_call.1} parent=11 // pred_region
          _
        $region40: #{tpu_custom_call.1} parent=11 // pred_fallthru
          _
        // Predicated region
        $region41: #{tpu_custom_call.1} parent=11 // pred_check
          %p362 = pneg %p216
        $region42: #{tpu_custom_call.1} parent=11 // pred_check_branch
          %364 = sbr.rel (%p362) target = $region44
        $region43: #{tpu_custom_call.1} parent=11 // pred_region
          _
        $region44: #{tpu_custom_call.1} parent=11 // pred_fallthru
          _
        // Predicated region
        $region45: #{tpu_custom_call.1} parent=11 // pred_check
          %p365 = pneg %p237
        $region46: #{tpu_custom_call.1} parent=11 // pred_check_branch
          %367 = sbr.rel (%p365) target = $region48
        $region47: #{tpu_custom_call.1} parent=11 // pred_region
          _
        $region48: #{tpu_custom_call.1} parent=11 // pred_fallthru
          _
        // Predicated region
        $region49: #{tpu_custom_call.1} parent=11 // pred_check
          %p368 = pneg %p258
        $region50: #{tpu_custom_call.1} parent=11 // pred_check_branch
          %370 = sbr.rel (%p368) target = $region52
        $region51: #{tpu_custom_call.1} parent=11 // pred_region
          _
        $region52: #{tpu_custom_call.1} parent=11 // pred_fallthru
          _
        // Predicated region
        $region53: #{tpu_custom_call.1} parent=11 // pred_check
          %p371 = pneg %p279
        $region54: #{tpu_custom_call.1} parent=11 // pred_check_branch
          %373 = sbr.rel (%p371) target = $region56
        $region55: #{tpu_custom_call.1} parent=11 // pred_region
          _
        $region56: #{tpu_custom_call.1} parent=11 // pred_fallthru
          _
        // Predicated region
        $region57: #{tpu_custom_call.1} parent=11 // pred_check
          %p374 = pneg %p300
        $region58: #{tpu_custom_call.1} parent=11 // pred_check_branch
          %376 = sbr.rel (%p374) target = $region60
        $region59: #{tpu_custom_call.1} parent=11 // pred_region
          _
        $region60: #{tpu_custom_call.1} parent=11 // pred_fallthru
          _
      $region12: #{tpu_custom_call.1} parent=5 // pred_fallthru
        _
      %p377 = scmp.lt.s32.totalorder %s22, 2
      // Predicated region
      $region61: #{tpu_custom_call.1} parent=5 // pred_check
        %p378 = pneg %p377
      $region62: #{tpu_custom_call.1} parent=5 // pred_check_branch
        %380 = sbr.rel (%p378) target = $region64
      $region63: #{tpu_custom_call.1} parent=5 // pred_region
        // Predicated region
        $region65: #{tpu_custom_call.1} parent=63 // pred_check
          %p381 = pneg %p42
        $region66: #{tpu_custom_call.1} parent=63 // pred_check_branch
          %383 = sbr.rel (%p381) target = $region68
        $region67: #{tpu_custom_call.1} parent=63 // pred_region
          %p384 = scmp.lt.s32.totalorder %s22, 1
          %s385 = scalar_select %p384, %s22, 1
          %s386 = smul.addr %s385, 8
          %s387 = scalar_lea.vmem %s0, %s386
        $region68: #{tpu_custom_call.1} parent=63 // pred_fallthru
          _
      $region64: #{tpu_custom_call.1} parent=5 // pred_fallthru
        _
      %p388 = scmp.le.s32.totalorder 1, %s22
      %p389 = scmp.lt.s32.totalorder %s22, 3
      %p390 = pnand %p388, %p389
      %p391 = pneg %p390
      // Predicated region
      $region69: #{tpu_custom_call.1} parent=5 // pred_check
        _
      $region70: #{tpu_custom_call.1} parent=5 // pred_check_branch
        %393 = sbr.rel (%p390) target = $region72
      $region71: #{tpu_custom_call.1} parent=5 // pred_region
        %s394 = ssub.s32 %s22, 1
        %p395 = scmp.lt.s32.totalorder %s27, 1
        %s396 = scalar_select %p395, %s27, 1
        %s397 = smul.addr %s396, 8
        %s398 = scalar_lea.vmem %s0, %s397
        %p399 = pneg %p48
        %p400 = pneg %p45
        %p401 = pneg %p69
        %p402 = pneg %p66
        %p403 = pneg %p90
        %p404 = pneg %p87
        %p405 = pneg %p111
        %p406 = pneg %p108
        %p407 = pneg %p132
        %p408 = pneg %p129
        %p409 = pneg %p153
        %p410 = pneg %p150
        %p411 = pneg %p174
        %p412 = pneg %p171
        %p413 = pneg %p195
        %p414 = pneg %p192
        %p415 = pneg %p216
        %p416 = pneg %p213
        %p417 = pneg %p237
        %p418 = pneg %p234
        %p419 = pneg %p258
        %p420 = pneg %p255
        %p421 = pneg %p279
        %p422 = pneg %p276
        %p423 = pneg %p300
        %p424 = pneg %p297
        %p425 = pneg %p326
        %p426 = pneg %p323
        %s427 = sand.u32 %s313, 1
        %s428 = scalar_lea.sflag [#allocation6], %s427
        %s429 = sand.u32 %s313, 1
        %s430 = smul.addr %s429, 8
        %s431 = scalar_lea.vmem [#allocation5], %s430
        %p432 = scmp.lt.s32.totalorder %s27, 1
        %s433 = scalar_select %p432, %s27, 1
        %s434 = smul.addr %s433, 8
        %s435 = scalar_lea.vmem %s0, %s434
        %v437 = vld [vmem:[%s435] sm:$0xff]
        %v438 = vld [vmem:[%s1] sm:$0x1]
        %v439 = vld [vmem:[%s2] sm:$0x1]
        %vm440 = vcmask 261120
        %v441 = vsel %vm440, %v437, 0.0
        %442 = vadd.xlane.f32.xlu0 %v441
        %v443 = vpop.xlane.xlu0 %442
        %v444 = vrcp.pop 32.0
        %v445 = vmul.f32 %v443, %v444
        %v446 = vsub.f32 %v437, %v445
        %v447 = vmul.f32 %v446, %v446
        %v448 = vsel %vm440, %v447, 0.0
        %449 = vadd.xlane.f32.xlu0 %v448
        %v450 = vpop.xlane.xlu0 %449
        %v451 = vmul.f32 %v450, %v444
        %v452 = vadd.f32 %v451, 1e-05
        %v453 = vrsqrt.pop %v452
        %v454 = vmul.f32 %v446, %v453
        %v456 = vlaneseq
        %v457 = vshrl.u32 %v456, 7
        %v458 = vsub.s32 0, %v457
        %v459 = vrot.slane %v438, %v458
        %v461 = vmul.f32 %v454, %v459
        %v463 = vlaneseq
        %v464 = vshrl.u32 %v463, 7
        %v465 = vsub.s32 0, %v464
        %v466 = vrot.slane %v439, %v465
        %v468 = vadd.f32 %v461, %v466
        %v469 = vpack.c.bf16 %v468, %v468
        %v470 = vld [vmem:[%s3] sm:$0xf]
        %v471 = vld [vmem:[%s3 + $0x4] sm:$0xf]
        %v472 = vld [vmem:[%s3 + $0x8] sm:$0xf]
        %v473 = vld [vmem:[%s3 + $0xc] sm:$0xf]
        %v474 = vld [vmem:[%s4] sm:$0x1]
        %v476 = vlaneseq
        %v477 = vshrl.u32 %v476, 7
        %v478 = vsub.s32 0, %v477
        %v479 = vrot.slane %v474, %v478
        %v485 = vunpack.c.l.b16 %v470
        %v486 = vunpack.c.l.b16 %v471
        %v487 = vunpack.c.l.b16 %v472
        %v488 = vunpack.c.l.b16 %v473
        %v489 = vpack.c.b16 %v486, %v485
        %v490 = vpack.c.b16 %v488, %v487
        %v494 = vsel %vm440, %v469, 0
        %496 = vmatprep.subr.bf16.mxu0 0
        %497 = vmatpush1.bf16.msra.mxu0 %v489
        %498 = vmatprep.subr.bf16.mxu0 0
        %499 = vmatpush1.bf16.msra.mxu0 %v490
        %500 = vmatprep.subr.bf16.mxu0 0
        %501 = vmatpush1.bf16.msra.mxu0 0
        %502 = vmatprep.subr.bf16.mxu0 0
        %503 = vmatpush1.bf16.msra.mxu0 0
        %504 = vmatprep.subr.bf16.mxu0 0
        %505 = vmatpush1.bf16.msra.mxu0 0
        %506 = vmatprep.subr.bf16.mxu0 0
        %507 = vmatpush1.bf16.msra.mxu0 0
        %508 = vmatprep.subr.bf16.mxu0 0
        %509 = vmatpush1.bf16.msra.mxu0 0
        %510 = vmatprep.subr.bf16.mxu0 0
        %511 = vmatpush1.bf16.msra.mxu0 0
        %512 = vmatprep.subr.bf16.mxu0 0
        %513 = vmatpush1.bf16.msra.mxu0 0
        %514 = vmatprep.subr.bf16.mxu0 0
        %515 = vmatpush1.bf16.msra.mxu0 0
        %516 = vmatprep.subr.bf16.mxu0 0
        %517 = vmatpush1.bf16.msra.mxu0 0
        %518 = vmatprep.subr.bf16.mxu0 0
        %519 = vmatpush1.bf16.msra.mxu0 0
        %520 = vmatprep.subr.bf16.mxu0 0
        %521 = vmatpush1.bf16.msra.mxu0 0
        %522 = vmatprep.subr.bf16.mxu0 0
        %523 = vmatpush1.bf16.msra.mxu0 0
        %524 = vmatprep.subr.bf16.mxu0 0
        %525 = vmatpush1.bf16.msra.mxu0 0
        %526 = vmatprep.subr.bf16.mxu0 0
        %527 = vmatpush1.bf16.msra.mxu0 0
        %528 = vmatprep.mubr.bf16.mxu0 0
        %529 = vmatmul.mubr.bf16.gmra.mrb[0].mxu0 %v494
        %v530 = vpop.f32.mrb[0].mxu0
        %v531 = vadd.f32 %v479, %v530
        %v532 = vpop.f32.mrb[0].mxu0
        %v533 = vpop.f32.mrb[0].mxu0
        %v534 = vpop.f32.mrb[0].mxu0
        %535 = vdwg.mxu0
        %v536 = vpack.c.bf16 %v531, %v531
        %vm537 = vcmask 781312
        %538 = vst.msk [vmem:[#allocation2] sm:$0xf] %vm537, %v536
        %v539 = vlaneseq
        %v540 = vshrl.u32 %v539, 7
        %v541 = vlaneseq
        %v542 = vand.u32 %v541, 127
        %vm543 = vcmp.le.s32.totalorder %v542, %v540
        %v544 = vsel %vm543, 0.0, -1e+30
        %v545 = vld [vmem:[#allocation2] sm:$0xf]
        %v547 = vunpack.c.l.b16 %v545
        %v548 = vpack.c.b16 %v547, %v547
        %549 = vrot.lane.b32.xlu0 %v548, 96
        %v550 = vpop.permute.xlu0 %549
        %vm551 = vcmask 64512
        %v553 = vsel %vm551, %v545, 0
        %v556 = vsel %vm551, %v550, 0
        %558 = vmatprep.subr.bf16.mxu0 0
        %559 = vmatpush1.bf16.xpose.msra.mxu0 %v556
        %560 = vmatprep.subr.bf16.mxu0 0
        %561 = vmatpush1.bf16.xpose.msra.mxu0 0
        %562 = vmatprep.subr.bf16.mxu0 0
        %563 = vmatpush1.bf16.xpose.msra.mxu0 0
        %564 = vmatprep.subr.bf16.mxu0 0
        %565 = vmatpush1.bf16.xpose.msra.mxu0 0
        %566 = vmatprep.subr.bf16.mxu0 0
        %567 = vmatpush1.bf16.xpose.msra.mxu0 0
        %568 = vmatprep.subr.bf16.mxu0 0
        %569 = vmatpush1.bf16.xpose.msra.mxu0 0
        %570 = vmatprep.subr.bf16.mxu0 0
        %571 = vmatpush1.bf16.xpose.msra.mxu0 0
        %572 = vmatprep.subr.bf16.mxu0 0
        %573 = vmatpush1.bf16.xpose.msra.mxu0 0
        %574 = vmatprep.subr.bf16.mxu0 0
        %575 = vmatpush1.bf16.xpose.msra.mxu0 0
        %576 = vmatprep.subr.bf16.mxu0 0
        %577 = vmatpush1.bf16.xpose.msra.mxu0 0
        %578 = vmatprep.subr.bf16.mxu0 0
        %579 = vmatpush1.bf16.xpose.msra.mxu0 0
        %580 = vmatprep.subr.bf16.mxu0 0
        %581 = vmatpush1.bf16.xpose.msra.mxu0 0
        %582 = vmatprep.subr.bf16.mxu0 0
        %583 = vmatpush1.bf16.xpose.msra.mxu0 0
        %584 = vmatprep.subr.bf16.mxu0 0
        %585 = vmatpush1.bf16.xpose.msra.mxu0 0
        %586 = vmatprep.subr.bf16.mxu0 0
        %587 = vmatpush1.bf16.xpose.msra.mxu0 0
        %588 = vmatprep.subr.bf16.mxu0 0
        %589 = vmatpush1.bf16.xpose.msra.mxu0 0
        %590 = vmatprep.mubr.bf16.mxu0 0
        %591 = vmatmul.mubr.bf16.gmra.mrb[0].mxu0 %v553
        %v592 = vpop.f32.mrb[0].mxu0
        %v593 = vadd.f32 %v544, %v592
        %v594 = vpop.f32.mrb[0].mxu0
        %v595 = vpop.f32.mrb[0].mxu0
        %v596 = vpop.f32.mrb[0].mxu0
        %597 = vdwg.mxu0
        %v598 = vsel %vm551, %v593, -inf
        %599 = vmax.xlane.f32.xlu0 %v598
        %v600 = vpop.xlane.xlu0 %599
        %v601 = vsub.f32 %v593, %v600
        %v602 = vmul.f32 %v601, 1.442695
        %v603 = vpow.pop %v602
        %v604 = vsel %vm551, %v603, 0.0
        %605 = vadd.xlane.f32.xlu0 %v604
        %v606 = vpop.xlane.xlu0 %605
        %v607 = vpack.c.bf16 %v603, %v603
        %608 = vrot.lane.b32.xlu0 %v548, 64
        %v609 = vpop.permute.xlu0 %608
        %v611 = vsel %vm551, %v607, 0
        %vm613 = vcmask 1043456
        %v615 = vsel %vm613, %v609, 0
        %617 = vmatprep.subr.bf16.mxu0 0
        %618 = vmatpush1.bf16.msra.mxu0 %v615
        %619 = vmatprep.subr.bf16.mxu0 0
        %620 = vmatpush1.bf16.msra.mxu0 0
        %621 = vmatprep.subr.bf16.mxu0 0
        %622 = vmatpush1.bf16.msra.mxu0 0
        %623 = vmatprep.subr.bf16.mxu0 0
        %624 = vmatpush1.bf16.msra.mxu0 0
        %625 = vmatprep.subr.bf16.mxu0 0
        %626 = vmatpush1.bf16.msra.mxu0 0
        %627 = vmatprep.subr.bf16.mxu0 0
        %628 = vmatpush1.bf16.msra.mxu0 0
        %629 = vmatprep.subr.bf16.mxu0 0
        %630 = vmatpush1.bf16.msra.mxu0 0
        %631 = vmatprep.subr.bf16.mxu0 0
        %632 = vmatpush1.bf16.msra.mxu0 0
        %633 = vmatprep.subr.bf16.mxu0 0
        %634 = vmatpush1.bf16.msra.mxu0 0
        %635 = vmatprep.subr.bf16.mxu0 0
        %636 = vmatpush1.bf16.msra.mxu0 0
        %637 = vmatprep.subr.bf16.mxu0 0
        %638 = vmatpush1.bf16.msra.mxu0 0
        %639 = vmatprep.subr.bf16.mxu0 0
        %640 = vmatpush1.bf16.msra.mxu0 0
        %641 = vmatprep.subr.bf16.mxu0 0
        %642 = vmatpush1.bf16.msra.mxu0 0
        %643 = vmatprep.subr.bf16.mxu0 0
        %644 = vmatpush1.bf16.msra.mxu0 0
        %645 = vmatprep.subr.bf16.mxu0 0
        %646 = vmatpush1.bf16.msra.mxu0 0
        %647 = vmatprep.subr.bf16.mxu0 0
        %648 = vmatpush1.bf16.msra.mxu0 0
        %649 = vmatprep.mubr.bf16.mxu0 0
        %650 = vmatmul.mubr.bf16.gmra.mrb[0].mxu0 %v611
        %v651 = vpop.f32.mrb[0].mxu0
        %v652 = vadd.f32 0.0, %v651
        %v653 = vpop.f32.mrb[0].mxu0
        %v654 = vpop.f32.mrb[0].mxu0
        %v655 = vpop.f32.mrb[0].mxu0
        %656 = vdwg.mxu0
        %v657 = vrcp.pop %v606
        %v658 = vmul.f32 %v652, %v657
        %v659 = vpack.c.bf16 %v658, %v658
        %660 = vrot.lane.b32.xlu0 %v548, 120
        %v661 = vpop.permute.xlu0 %660
        %662 = vrot.lane.b32.xlu0 %v548, 88
        %v663 = vpop.permute.xlu0 %662
        %v665 = vsel %vm551, %v661, 0
        %v668 = vsel %vm551, %v663, 0
        %670 = vmatprep.subr.bf16.mxu0 0
        %671 = vmatpush1.bf16.xpose.msra.mxu0 %v668
        %672 = vmatprep.subr.bf16.mxu0 0
        %673 = vmatpush1.bf16.xpose.msra.mxu0 0
        %674 = vmatprep.subr.bf16.mxu0 0
        %675 = vmatpush1.bf16.xpose.msra.mxu0 0
        %676 = vmatprep.subr.bf16.mxu0 0
        %677 = vmatpush1.bf16.xpose.msra.mxu0 0
        %678 = vmatprep.subr.bf16.mxu0 0
        %679 = vmatpush1.bf16.xpose.msra.mxu0 0
        %680 = vmatprep.subr.bf16.mxu0 0
        %681 = vmatpush1.bf16.xpose.msra.mxu0 0
        %682 = vmatprep.subr.bf16.mxu0 0
        %683 = vmatpush1.bf16.xpose.msra.mxu0 0
        %684 = vmatprep.subr.bf16.mxu0 0
        %685 = vmatpush1.bf16.xpose.msra.mxu0 0
        %686 = vmatprep.subr.bf16.mxu0 0
        %687 = vmatpush1.bf16.xpose.msra.mxu0 0
        %688 = vmatprep.subr.bf16.mxu0 0
        %689 = vmatpush1.bf16.xpose.msra.mxu0 0
        %690 = vmatprep.subr.bf16.mxu0 0
        %691 = vmatpush1.bf16.xpose.msra.mxu0 0
        %692 = vmatprep.subr.bf16.mxu0 0
        %693 = vmatpush1.bf16.xpose.msra.mxu0 0
        %694 = vmatprep.subr.bf16.mxu0 0
        %695 = vmatpush1.bf16.xpose.msra.mxu0 0
        %696 = vmatprep.subr.bf16.mxu0 0
        %697 = vmatpush1.bf16.xpose.msra.mxu0 0
        %698 = vmatprep.subr.bf16.mxu0 0
        %699 = vmatpush1.bf16.xpose.msra.mxu0 0
        %700 = vmatprep.subr.bf16.mxu0 0
        %701 = vmatpush1.bf16.xpose.msra.mxu0 0
        %702 = vmatprep.mubr.bf16.mxu0 0
        %703 = vmatmul.mubr.bf16.gmra.mrb[0].mxu0 %v665
        %v704 = vpop.f32.mrb[0].mxu0
        %v705 = vadd.f32 %v544, %v704
        %v706 = vpop.f32.mrb[0].mxu0
        %v707 = vpop.f32.mrb[0].mxu0
        %v708 = vpop.f32.mrb[0].mxu0
        %709 = vdwg.mxu0
        %v710 = vsel %vm551, %v705, -inf
        %711 = vmax.xlane.f32.xlu0 %v710
        %v712 = vpop.xlane.xlu0 %711
        %v713 = vsub.f32 %v705, %v712
        %v714 = vmul.f32 %v713, 1.442695
        %v715 = vpow.pop %v714
        %v716 = vsel %vm551, %v715, 0.0
        %717 = vadd.xlane.f32.xlu0 %v716
        %v718 = vpop.xlane.xlu0 %717
        %v719 = vpack.c.bf16 %v715, %v715
        %720 = vrot.lane.b32.xlu0 %v548, 56
        %v721 = vpop.permute.xlu0 %720
        %v723 = vsel %vm551, %v719, 0
        %v726 = vsel %vm613, %v721, 0
        %728 = vmatprep.subr.bf16.mxu0 0
        %729 = vmatpush1.bf16.msra.mxu0 %v726
        %730 = vmatprep.subr.bf16.mxu0 0
        %731 = vmatpush1.bf16.msra.mxu0 0
        %732 = vmatprep.subr.bf16.mxu0 0
        %733 = vmatpush1.bf16.msra.mxu0 0
        %734 = vmatprep.subr.bf16.mxu0 0
        %735 = vmatpush1.bf16.msra.mxu0 0
        %736 = vmatprep.subr.bf16.mxu0 0
        %737 = vmatpush1.bf16.msra.mxu0 0
        %738 = vmatprep.subr.bf16.mxu0 0
        %739 = vmatpush1.bf16.msra.mxu0 0
        %740 = vmatprep.subr.bf16.mxu0 0
        %741 = vmatpush1.bf16.msra.mxu0 0
        %742 = vmatprep.subr.bf16.mxu0 0
        %743 = vmatpush1.bf16.msra.mxu0 0
        %744 = vmatprep.subr.bf16.mxu0 0
        %745 = vmatpush1.bf16.msra.mxu0 0
        %746 = vmatprep.subr.bf16.mxu0 0
        %747 = vmatpush1.bf16.msra.mxu0 0
        %748 = vmatprep.subr.bf16.mxu0 0
        %749 = vmatpush1.bf16.msra.mxu0 0
        %750 = vmatprep.subr.bf16.mxu0 0
        %751 = vmatpush1.bf16.msra.mxu0 0
        %752 = vmatprep.subr.bf16.mxu0 0
        %753 = vmatpush1.bf16.msra.mxu0 0
        %754 = vmatprep.subr.bf16.mxu0 0
        %755 = vmatpush1.bf16.msra.mxu0 0
        %756 = vmatprep.subr.bf16.mxu0 0
        %757 = vmatpush1.bf16.msra.mxu0 0
        %758 = vmatprep.subr.bf16.mxu0 0
        %759 = vmatpush1.bf16.msra.mxu0 0
        %760 = vmatprep.mubr.bf16.mxu0 0
        %761 = vmatmul.mubr.bf16.gmra.mrb[0].mxu0 %v723
        %v762 = vpop.f32.mrb[0].mxu0
        %v763 = vadd.f32 0.0, %v762
        %v764 = vpop.f32.mrb[0].mxu0
        %v765 = vpop.f32.mrb[0].mxu0
        %v766 = vpop.f32.mrb[0].mxu0
        %767 = vdwg.mxu0
        %v768 = vrcp.pop %v718
        %v769 = vmul.f32 %v763, %v768
        %v770 = vpack.c.bf16 %v769, %v769
        %771 = vrot.lane.b32.xlu0 %v548, 112
        %v772 = vpop.permute.xlu0 %771
        %773 = vrot.lane.b32.xlu0 %v548, 80
        %v774 = vpop.permute.xlu0 %773
        %v776 = vsel %vm551, %v772, 0
        %v779 = vsel %vm551, %v774, 0
        %781 = vmatprep.subr.bf16.mxu0 0
        %782 = vmatpush1.bf16.xpose.msra.mxu0 %v779
        %783 = vmatprep.subr.bf16.mxu0 0
        %784 = vmatpush1.bf16.xpose.msra.mxu0 0
        %785 = vmatprep.subr.bf16.mxu0 0
        %786 = vmatpush1.bf16.xpose.msra.mxu0 0
        %787 = vmatprep.subr.bf16.mxu0 0
        %788 = vmatpush1.bf16.xpose.msra.mxu0 0
        %789 = vmatprep.subr.bf16.mxu0 0
        %790 = vmatpush1.bf16.xpose.msra.mxu0 0
        %791 = vmatprep.subr.bf16.mxu0 0
        %792 = vmatpush1.bf16.xpose.msra.mxu0 0
        %793 = vmatprep.subr.bf16.mxu0 0
        %794 = vmatpush1.bf16.xpose.msra.mxu0 0
        %795 = vmatprep.subr.bf16.mxu0 0
        %796 = vmatpush1.bf16.xpose.msra.mxu0 0
        %797 = vmatprep.subr.bf16.mxu0 0
        %798 = vmatpush1.bf16.xpose.msra.mxu0 0
        %799 = vmatprep.subr.bf16.mxu0 0
        %800 = vmatpush1.bf16.xpose.msra.mxu0 0
        %801 = vmatprep.subr.bf16.mxu0 0
        %802 = vmatpush1.bf16.xpose.msra.mxu0 0
        %803 = vmatprep.subr.bf16.mxu0 0
        %804 = vmatpush1.bf16.xpose.msra.mxu0 0
        %805 = vmatprep.subr.bf16.mxu0 0
        %806 = vmatpush1.bf16.xpose.msra.mxu0 0
        %807 = vmatprep.subr.bf16.mxu0 0
        %808 = vmatpush1.bf16.xpose.msra.mxu0 0
        %809 = vmatprep.subr.bf16.mxu0 0
        %810 = vmatpush1.bf16.xpose.msra.mxu0 0
        %811 = vmatprep.subr.bf16.mxu0 0
        %812 = vmatpush1.bf16.xpose.msra.mxu0 0
        %813 = vmatprep.mubr.bf16.mxu0 0
        %814 = vmatmul.mubr.bf16.gmra.mrb[0].mxu0 %v776
        %v815 = vpop.f32.mrb[0].mxu0
        %v816 = vadd.f32 %v544, %v815
        %v817 = vpop.f32.mrb[0].mxu0
        %v818 = vpop.f32.mrb[0].mxu0
        %v819 = vpop.f32.mrb[0].mxu0
        %820 = vdwg.mxu0
        %v821 = vsel %vm551, %v816, -inf
        %822 = vmax.xlane.f32.xlu0 %v821
        %v823 = vpop.xlane.xlu0 %822
        %v824 = vsub.f32 %v816, %v823
        %v825 = vmul.f32 %v824, 1.442695
        %v826 = vpow.pop %v825
        %v827 = vsel %vm551, %v826, 0.0
        %828 = vadd.xlane.f32.xlu0 %v827
        %v829 = vpop.xlane.xlu0 %828
        %v830 = vpack.c.bf16 %v826, %v826
        %831 = vrot.lane.b32.xlu0 %v548, 48
        %v832 = vpop.permute.xlu0 %831
        %v834 = vsel %vm551, %v830, 0
        %v837 = vsel %vm613, %v832, 0
        %839 = vmatprep.subr.bf16.mxu0 0
        %840 = vmatpush1.bf16.msra.mxu0 %v837
        %841 = vmatprep.subr.bf16.mxu0 0
        %842 = vmatpush1.bf16.msra.mxu0 0
        %843 = vmatprep.subr.bf16.mxu0 0
        %844 = vmatpush1.bf16.msra.mxu0 0
        %845 = vmatprep.subr.bf16.mxu0 0
        %846 = vmatpush1.bf16.msra.mxu0 0
        %847 = vmatprep.subr.bf16.mxu0 0
        %848 = vmatpush1.bf16.msra.mxu0 0
        %849 = vmatprep.subr.bf16.mxu0 0
        %850 = vmatpush1.bf16.msra.mxu0 0
        %851 = vmatprep.subr.bf16.mxu0 0
        %852 = vmatpush1.bf16.msra.mxu0 0
        %853 = vmatprep.subr.bf16.mxu0 0
        %854 = vmatpush1.bf16.msra.mxu0 0
        %855 = vmatprep.subr.bf16.mxu0 0
        %856 = vmatpush1.bf16.msra.mxu0 0
        %857 = vmatprep.subr.bf16.mxu0 0
        %858 = vmatpush1.bf16.msra.mxu0 0
        %859 = vmatprep.subr.bf16.mxu0 0
        %860 = vmatpush1.bf16.msra.mxu0 0
        %861 = vmatprep.subr.bf16.mxu0 0
        %862 = vmatpush1.bf16.msra.mxu0 0
        %863 = vmatprep.subr.bf16.mxu0 0
        %864 = vmatpush1.bf16.msra.mxu0 0
        %865 = vmatprep.subr.bf16.mxu0 0
        %866 = vmatpush1.bf16.msra.mxu0 0
        %867 = vmatprep.subr.bf16.mxu0 0
        %868 = vmatpush1.bf16.msra.mxu0 0
        %869 = vmatprep.subr.bf16.mxu0 0
        %870 = vmatpush1.bf16.msra.mxu0 0
        %871 = vmatprep.mubr.bf16.mxu0 0
        %872 = vmatmul.mubr.bf16.gmra.mrb[0].mxu0 %v834
        %v873 = vpop.f32.mrb[0].mxu0
        %v874 = vadd.f32 0.0, %v873
        %v875 = vpop.f32.mrb[0].mxu0
        %v876 = vpop.f32.mrb[0].mxu0
        %v877 = vpop.f32.mrb[0].mxu0
        %878 = vdwg.mxu0
        %v879 = vrcp.pop %v829
        %v880 = vmul.f32 %v874, %v879
        %v881 = vpack.c.bf16 %v880, %v880
        %882 = vrot.lane.b32.xlu0 %v548, 104
        %v883 = vpop.permute.xlu0 %882
        %884 = vrot.lane.b32.xlu0 %v548, 72
        %v885 = vpop.permute.xlu0 %884
        %v887 = vsel %vm551, %v883, 0
        %v890 = vsel %vm551, %v885, 0
        %892 = vmatprep.subr.bf16.mxu0 0
        %893 = vmatpush1.bf16.xpose.msra.mxu0 %v890
        %894 = vmatprep.subr.bf16.mxu0 0
        %895 = vmatpush1.bf16.xpose.msra.mxu0 0
        %896 = vmatprep.subr.bf16.mxu0 0
        %897 = vmatpush1.bf16.xpose.msra.mxu0 0
        %898 = vmatprep.subr.bf16.mxu0 0
        %899 = vmatpush1.bf16.xpose.msra.mxu0 0
        %900 = vmatprep.subr.bf16.mxu0 0
        %901 = vmatpush1.bf16.xpose.msra.mxu0 0
        %902 = vmatprep.subr.bf16.mxu0 0
        %903 = vmatpush1.bf16.xpose.msra.mxu0 0
        %904 = vmatprep.subr.bf16.mxu0 0
        %905 = vmatpush1.bf16.xpose.msra.mxu0 0
        %906 = vmatprep.subr.bf16.mxu0 0
        %907 = vmatpush1.bf16.xpose.msra.mxu0 0
        %908 = vmatprep.subr.bf16.mxu0 0
        %909 = vmatpush1.bf16.xpose.msra.mxu0 0
        %910 = vmatprep.subr.bf16.mxu0 0
        %911 = vmatpush1.bf16.xpose.msra.mxu0 0
        %912 = vmatprep.subr.bf16.mxu0 0
        %913 = vmatpush1.bf16.xpose.msra.mxu0 0
        %914 = vmatprep.subr.bf16.mxu0 0
        %915 = vmatpush1.bf16.xpose.msra.mxu0 0
        %916 = vmatprep.subr.bf16.mxu0 0
        %917 = vmatpush1.bf16.xpose.msra.mxu0 0
        %918 = vmatprep.subr.bf16.mxu0 0
        %919 = vmatpush1.bf16.xpose.msra.mxu0 0
        %920 = vmatprep.subr.bf16.mxu0 0
        %921 = vmatpush1.bf16.xpose.msra.mxu0 0
        %922 = vmatprep.subr.bf16.mxu0 0
        %923 = vmatpush1.bf16.xpose.msra.mxu0 0
        %924 = vmatprep.mubr.bf16.mxu0 0
        %925 = vmatmul.mubr.bf16.gmra.mrb[0].mxu0 %v887
        %v926 = vpop.f32.mrb[0].mxu0
        %v927 = vadd.f32 %v544, %v926
        %v928 = vpop.f32.mrb[0].mxu0
        %v929 = vpop.f32.mrb[0].mxu0
        %v930 = vpop.f32.mrb[0].mxu0
        %931 = vdwg.mxu0
        %v932 = vsel %vm551, %v927, -inf
        %933 = vmax.xlane.f32.xlu0 %v932
        %v934 = vpop.xlane.xlu0 %933
        %v935 = vsub.f32 %v927, %v934
        %v936 = vmul.f32 %v935, 1.442695
        %v937 = vpow.pop %v936
        %v938 = vsel %vm551, %v937, 0.0
        %939 = vadd.xlane.f32.xlu0 %v938
        %v940 = vpop.xlane.xlu0 %939
        %v941 = vpack.c.bf16 %v937, %v937
        %942 = vrot.lane.b32.xlu0 %v548, 40
        %v943 = vpop.permute.xlu0 %942
        %v945 = vsel %vm551, %v941, 0
        %v948 = vsel %vm613, %v943, 0
        %950 = vmatprep.subr.bf16.mxu0 0
        %951 = vmatpush1.bf16.msra.mxu0 %v948
        %952 = vmatprep.subr.bf16.mxu0 0
        %953 = vmatpush1.bf16.msra.mxu0 0
        %954 = vmatprep.subr.bf16.mxu0 0
        %955 = vmatpush1.bf16.msra.mxu0 0
        %956 = vmatprep.subr.bf16.mxu0 0
        %957 = vmatpush1.bf16.msra.mxu0 0
        %958 = vmatprep.subr.bf16.mxu0 0
        %959 = vmatpush1.bf16.msra.mxu0 0
        %960 = vmatprep.subr.bf16.mxu0 0
        %961 = vmatpush1.bf16.msra.mxu0 0
        %962 = vmatprep.subr.bf16.mxu0 0
        %963 = vmatpush1.bf16.msra.mxu0 0
        %964 = vmatprep.subr.bf16.mxu0 0
        %965 = vmatpush1.bf16.msra.mxu0 0
        %966 = vmatprep.subr.bf16.mxu0 0
        %967 = vmatpush1.bf16.msra.mxu0 0
        %968 = vmatprep.subr.bf16.mxu0 0
        %969 = vmatpush1.bf16.msra.mxu0 0
        %970 = vmatprep.subr.bf16.mxu0 0
        %971 = vmatpush1.bf16.msra.mxu0 0
        %972 = vmatprep.subr.bf16.mxu0 0
        %973 = vmatpush1.bf16.msra.mxu0 0
        %974 = vmatprep.subr.bf16.mxu0 0
        %975 = vmatpush1.bf16.msra.mxu0 0
        %976 = vmatprep.subr.bf16.mxu0 0
        %977 = vmatpush1.bf16.msra.mxu0 0
        %978 = vmatprep.subr.bf16.mxu0 0
        %979 = vmatpush1.bf16.msra.mxu0 0
        %980 = vmatprep.subr.bf16.mxu0 0
        %981 = vmatpush1.bf16.msra.mxu0 0
        %982 = vmatprep.mubr.bf16.mxu0 0
        %983 = vmatmul.mubr.bf16.gmra.mrb[0].mxu0 %v945
        %v984 = vpop.f32.mrb[0].mxu0
        %v985 = vadd.f32 0.0, %v984
        %v986 = vpop.f32.mrb[0].mxu0
        %v987 = vpop.f32.mrb[0].mxu0
        %v988 = vpop.f32.mrb[0].mxu0
        %989 = vdwg.mxu0
        %v990 = vrcp.pop %v940
        %v991 = vmul.f32 %v985, %v990
        %v992 = vpack.c.bf16 %v991, %v991
        %994 = vrot.lane.b32.xlu0 %v770, 8
        %v995 = vpop.permute.xlu0 %994
        %997 = vrot.lane.b32.xlu0 %v881, 16
        %v998 = vpop.permute.xlu0 %997
        %1000 = vrot.lane.b32.xlu0 %v992, 24
        %v1001 = vpop.permute.xlu0 %1000
        %v1004 = vsel %vm551, %v659, %v995
        %vm1005 = vcmask 130048
        %v1007 = vsel %vm1005, %v1004, %v998
        %vm1008 = vcmask 195584
        %v1010 = vsel %vm1008, %v1007, %v1001
        %vm1012 = vcmask 257024
        %1013 = vst.msk [vmem:[#allocation3] sm:$0xf] %vm1012, %v1010
        %v1014 = vld [vmem:[#allocation3] sm:$0xf]
        %v1015 = vld [vmem:[%s5] sm:$0xf]
        %v1016 = vld [vmem:[%s5 + $0x4] sm:$0xf]
        %v1017 = vld [vmem:[%s5 + $0x8] sm:$0xf]
        %v1018 = vld [vmem:[%s5 + $0xc] sm:$0xf]
        %v1019 = vld [vmem:[%s6] sm:$0x1]
        %v1021 = vlaneseq
        %v1022 = vshrl.u32 %v1021, 7
        %v1023 = vsub.s32 0, %v1022
        %v1024 = vrot.slane %v1019, %v1023
        %v1030 = vunpack.c.l.b16 %v1015
        %v1031 = vunpack.c.l.b16 %v1016
        %v1032 = vunpack.c.l.b16 %v1017
        %v1033 = vunpack.c.l.b16 %v1018
        %v1034 = vpack.c.b16 %v1031, %v1030
        %v1035 = vpack.c.b16 %v1033, %v1032
        %v1039 = vsel %vm440, %v1014, 0
        %1041 = vmatprep.subr.bf16.mxu0 0
        %1042 = vmatpush1.bf16.msra.mxu0 %v1034
        %1043 = vmatprep.subr.bf16.mxu0 0
        %1044 = vmatpush1.bf16.msra.mxu0 %v1035
        %1045 = vmatprep.subr.bf16.mxu0 0
        %1046 = vmatpush1.bf16.msra.mxu0 0
        %1047 = vmatprep.subr.bf16.mxu0 0
        %1048 = vmatpush1.bf16.msra.mxu0 0
        %1049 = vmatprep.subr.bf16.mxu0 0
        %1050 = vmatpush1.bf16.msra.mxu0 0
        %1051 = vmatprep.subr.bf16.mxu0 0
        %1052 = vmatpush1.bf16.msra.mxu0 0
        %1053 = vmatprep.subr.bf16.mxu0 0
        %1054 = vmatpush1.bf16.msra.mxu0 0
        %1055 = vmatprep.subr.bf16.mxu0 0
        %1056 = vmatpush1.bf16.msra.mxu0 0
        %1057 = vmatprep.subr.bf16.mxu0 0
        %1058 = vmatpush1.bf16.msra.mxu0 0
        %1059 = vmatprep.subr.bf16.mxu0 0
        %1060 = vmatpush1.bf16.msra.mxu0 0
        %1061 = vmatprep.subr.bf16.mxu0 0
        %1062 = vmatpush1.bf16.msra.mxu0 0
        %1063 = vmatprep.subr.bf16.mxu0 0
        %1064 = vmatpush1.bf16.msra.mxu0 0
        %1065 = vmatprep.subr.bf16.mxu0 0
        %1066 = vmatpush1.bf16.msra.mxu0 0
        %1067 = vmatprep.subr.bf16.mxu0 0
        %1068 = vmatpush1.bf16.msra.mxu0 0
        %1069 = vmatprep.subr.bf16.mxu0 0
        %1070 = vmatpush1.bf16.msra.mxu0 0
        %1071 = vmatprep.subr.bf16.mxu0 0
        %1072 = vmatpush1.bf16.msra.mxu0 0
        %1073 = vmatprep.mubr.bf16.mxu0 0
        %1074 = vmatmul.mubr.bf16.gmra.mrb[0].mxu0 %v1039
        %v1075 = vpop.f32.mrb[0].mxu0
        %v1076 = vadd.f32 %v1024, %v1075
        %v1077 = vpop.f32.mrb[0].mxu0
        %v1078 = vpop.f32.mrb[0].mxu0
        %v1079 = vpop.f32.mrb[0].mxu0
        %1080 = vdwg.mxu0
        %v1081 = vld [vmem:[%s435] sm:$0xff]
        %v1082 = vadd.f32 %v1076, %v1081
        %v1083 = vld [vmem:[%s7] sm:$0x1]
        %v1084 = vld [vmem:[%s8] sm:$0x1]
        %v1085 = vsel %vm440, %v1082, 0.0
        %1086 = vadd.xlane.f32.xlu0 %v1085
        %v1087 = vpop.xlane.xlu0 %1086
        %v1088 = vmul.f32 %v1087, %v444
        %v1089 = vsub.f32 %v1082, %v1088
        %v1090 = vmul.f32 %v1089, %v1089
        %v1091 = vsel %vm440, %v1090, 0.0
        %1092 = vadd.xlane.f32.xlu0 %v1091
        %v1093 = vpop.xlane.xlu0 %1092
        %v1094 = vmul.f32 %v1093, %v444
        %v1095 = vadd.f32 %v1094, 1e-05
        %v1096 = vrsqrt.pop %v1095
        %v1097 = vmul.f32 %v1089, %v1096
        %v1099 = vlaneseq
        %v1100 = vshrl.u32 %v1099, 7
        %v1101 = vsub.s32 0, %v1100
        %v1102 = vrot.slane %v1083, %v1101
        %v1104 = vmul.f32 %v1097, %v1102
        %v1106 = vlaneseq
        %v1107 = vshrl.u32 %v1106, 7
        %v1108 = vsub.s32 0, %v1107
        %v1109 = vrot.slane %v1084, %v1108
        %v1111 = vadd.f32 %v1104, %v1109
        %v1112 = vpack.c.bf16 %v1111, %v1111
        %1113 = vst.msk [vmem:[#allocation3] sm:$0xf] %vm1012, %v1112
        %v1114 = vld [vmem:[%s12] sm:$0x1]
        %v1116 = vlaneseq
        %v1117 = vshrl.u32 %v1116, 7
        %v1118 = vsub.s32 0, %v1117
        %v1119 = vrot.slane %v1114, %v1118
        %v1121 = vadd.f32 %v1082, %v1119
        %1122 = vst.msk [vmem:[#allocation4] sm:$0xff] %vm440, %v1121
        %v1123 = vld [vmem:[#allocation3] sm:$0xf]
        %v1124 = vld [vmem:[%s9] sm:$0xf]
        %v1125 = vld [vmem:[%s9 + $0x4] sm:$0xf]
        %v1126 = vld [vmem:[%s9 + $0x8] sm:$0xf]
        %v1127 = vld [vmem:[%s9 + $0xc] sm:$0xf]
        %v1128 = vld [vmem:[%s10] sm:$0x1]
        %v1130 = vlaneseq
        %v1131 = vshrl.u32 %v1130, 7
        %v1132 = vsub.s32 0, %v1131
        %v1133 = vrot.slane %v1128, %v1132
        %v1139 = vunpack.c.l.b16 %v1124
        %v1140 = vunpack.c.l.b16 %v1125
        %v1141 = vunpack.c.l.b16 %v1126
        %v1142 = vunpack.c.l.b16 %v1127
        %v1143 = vpack.c.b16 %v1140, %v1139
        %v1144 = vpack.c.b16 %v1142, %v1141
        %v1148 = vsel %vm440, %v1123, 0
        %1150 = vmatprep.subr.bf16.mxu0 0
        %1151 = vmatpush1.bf16.msra.mxu0 %v1143
        %1152 = vmatprep.subr.bf16.mxu0 0
        %1153 = vmatpush1.bf16.msra.mxu0 %v1144
        %1154 = vmatprep.subr.bf16.mxu0 0
        %1155 = vmatpush1.bf16.msra.mxu0 0
        %1156 = vmatprep.subr.bf16.mxu0 0
        %1157 = vmatpush1.bf16.msra.mxu0 0
        %1158 = vmatprep.subr.bf16.mxu0 0
        %1159 = vmatpush1.bf16.msra.mxu0 0
        %1160 = vmatprep.subr.bf16.mxu0 0
        %1161 = vmatpush1.bf16.msra.mxu0 0
        %1162 = vmatprep.subr.bf16.mxu0 0
        %1163 = vmatpush1.bf16.msra.mxu0 0
        %1164 = vmatprep.subr.bf16.mxu0 0
        %1165 = vmatpush1.bf16.msra.mxu0 0
        %1166 = vmatprep.subr.bf16.mxu0 0
        %1167 = vmatpush1.bf16.msra.mxu0 0
        %1168 = vmatprep.subr.bf16.mxu0 0
        %1169 = vmatpush1.bf16.msra.mxu0 0
        %1170 = vmatprep.subr.bf16.mxu0 0
        %1171 = vmatpush1.bf16.msra.mxu0 0
        %1172 = vmatprep.subr.bf16.mxu0 0
        %1173 = vmatpush1.bf16.msra.mxu0 0
        %1174 = vmatprep.subr.bf16.mxu0 0
        %1175 = vmatpush1.bf16.msra.mxu0 0
        %1176 = vmatprep.subr.bf16.mxu0 0
        %1177 = vmatpush1.bf16.msra.mxu0 0
        %1178 = vmatprep.subr.bf16.mxu0 0
        %1179 = vmatpush1.bf16.msra.mxu0 0
        %1180 = vmatprep.subr.bf16.mxu0 0
        %1181 = vmatpush1.bf16.msra.mxu0 0
        %1182 = vmatprep.mubr.bf16.mxu0 0
        %1183 = vmatmul.mubr.bf16.gmra.mrb[0].mxu0 %v1148
        %v1184 = vpop.f32.mrb[0].mxu0
        %v1185 = vadd.f32 %v1133, %v1184
        %v1186 = vpop.f32.mrb[0].mxu0
        %v1187 = vpop.f32.mrb[0].mxu0
        %v1188 = vpop.f32.mrb[0].mxu0
        %1189 = vdwg.mxu0
        %v1190 = vmul.f32 %v1185, 1.702
        %v1191 = vxor.u32 %v1190, 2147483648
        %v1192 = vmul.f32 %v1191, 1.442695
        %v1193 = vpow.pop %v1192
        %v1194 = vadd.f32 %v1193, 1.0
        %v1195 = vrcp.pop %v1194
        %v1196 = vmul.f32 1.0, %v1195
        %v1197 = vmul.f32 %v1185, %v1196
        %v1198 = vld [vmem:[#allocation4] sm:$0xff]
        %v1199 = vpack.c.bf16 %v1197, %v1197
        %v1200 = vld [vmem:[%s11] sm:$0xf]
        %v1201 = vld [vmem:[%s11 + $0x4] sm:$0xf]
        %v1202 = vld [vmem:[%s11 + $0x8] sm:$0xf]
        %v1203 = vld [vmem:[%s11 + $0xc] sm:$0xf]
        %v1204 = vld [vmem:[%s11 + $0x10] sm:$0xf]
        %v1205 = vld [vmem:[%s11 + $0x14] sm:$0xf]
        %v1206 = vld [vmem:[%s11 + $0x18] sm:$0xf]
        %v1207 = vld [vmem:[%s11 + $0x1c] sm:$0xf]
        %v1208 = vld [vmem:[%s11 + $0x20] sm:$0xf]
        %v1209 = vld [vmem:[%s11 + $0x24] sm:$0xf]
        %v1210 = vld [vmem:[%s11 + $0x28] sm:$0xf]
        %v1211 = vld [vmem:[%s11 + $0x2c] sm:$0xf]
        %v1212 = vld [vmem:[%s11 + $0x30] sm:$0xf]
        %v1213 = vld [vmem:[%s11 + $0x34] sm:$0xf]
        %v1214 = vld [vmem:[%s11 + $0x38] sm:$0xf]
        %v1215 = vld [vmem:[%s11 + $0x3c] sm:$0xf]
        %v1232 = vunpack.c.l.b16 %v1200
        %v1233 = vunpack.c.l.b16 %v1201
        %v1234 = vunpack.c.l.b16 %v1202
        %v1235 = vunpack.c.l.b16 %v1203
        %v1236 = vunpack.c.l.b16 %v1204
        %v1237 = vunpack.c.l.b16 %v1205
        %v1238 = vunpack.c.l.b16 %v1206
        %v1239 = vunpack.c.l.b16 %v1207
        %v1240 = vunpack.c.l.b16 %v1208
        %v1241 = vunpack.c.l.b16 %v1209
        %v1242 = vunpack.c.l.b16 %v1210
        %v1243 = vunpack.c.l.b16 %v1211
        %v1244 = vunpack.c.l.b16 %v1212
        %v1245 = vunpack.c.l.b16 %v1213
        %v1246 = vunpack.c.l.b16 %v1214
        %v1247 = vunpack.c.l.b16 %v1215
        %v1248 = vpack.c.b16 %v1233, %v1232
        %v1249 = vpack.c.b16 %v1235, %v1234
        %v1250 = vpack.c.b16 %v1237, %v1236
        %v1251 = vpack.c.b16 %v1239, %v1238
        %v1252 = vpack.c.b16 %v1241, %v1240
        %v1253 = vpack.c.b16 %v1243, %v1242
        %v1254 = vpack.c.b16 %v1245, %v1244
        %v1255 = vpack.c.b16 %v1247, %v1246
        %1264 = vmatprep.subr.bf16.mxu0 0
        %1265 = vmatpush1.bf16.msra.mxu0 %v1248
        %1266 = vmatprep.subr.bf16.mxu0 0
        %1267 = vmatpush1.bf16.msra.mxu0 %v1249
        %1268 = vmatprep.subr.bf16.mxu0 0
        %1269 = vmatpush1.bf16.msra.mxu0 %v1250
        %1270 = vmatprep.subr.bf16.mxu0 0
        %1271 = vmatpush1.bf16.msra.mxu0 %v1251
        %1272 = vmatprep.subr.bf16.mxu0 0
        %1273 = vmatpush1.bf16.msra.mxu0 %v1252
        %1274 = vmatprep.subr.bf16.mxu0 0
        %1275 = vmatpush1.bf16.msra.mxu0 %v1253
        %1276 = vmatprep.subr.bf16.mxu0 0
        %1277 = vmatpush1.bf16.msra.mxu0 %v1254
        %1278 = vmatprep.subr.bf16.mxu0 0
        %1279 = vmatpush1.bf16.msra.mxu0 %v1255
        %1280 = vmatprep.subr.bf16.mxu0 0
        %1281 = vmatpush1.bf16.msra.mxu0 0
        %1282 = vmatprep.subr.bf16.mxu0 0
        %1283 = vmatpush1.bf16.msra.mxu0 0
        %1284 = vmatprep.subr.bf16.mxu0 0
        %1285 = vmatpush1.bf16.msra.mxu0 0
        %1286 = vmatprep.subr.bf16.mxu0 0
        %1287 = vmatpush1.bf16.msra.mxu0 0
        %1288 = vmatprep.subr.bf16.mxu0 0
        %1289 = vmatpush1.bf16.msra.mxu0 0
        %1290 = vmatprep.subr.bf16.mxu0 0
        %1291 = vmatpush1.bf16.msra.mxu0 0
        %1292 = vmatprep.subr.bf16.mxu0 0
        %1293 = vmatpush1.bf16.msra.mxu0 0
        %1294 = vmatprep.subr.bf16.mxu0 0
        %1295 = vmatpush1.bf16.msra.mxu0 0
        %1296 = vmatprep.mubr.bf16.mxu0 0
        %1297 = vmatmul.mubr.bf16.gmra.mrb[0].mxu0 %v1199
        %v1298 = vpop.f32.mrb[0].mxu0
        %v1299 = vadd.f32 0.0, %v1298
        %v1300 = vpop.f32.mrb[0].mxu0
        %v1301 = vpop.f32.mrb[0].mxu0
        %v1302 = vpop.f32.mrb[0].mxu0
        %1303 = vdwg.mxu0
        %v1304 = vadd.f32 %v1198, %v1299
        %1305 = vst.msk [vmem:[#allocation4] sm:$0xff] %vm440, %v1304
        %v1306 = vld [vmem:[#allocation4] sm:$0xff]
        %1307 = vst.msk [vmem:[%s431] sm:$0xff] %vm440, %v1306
        %s1308 = sand.u32 %s313, 1
        %s1309 = scalar_lea.sflag [#allocation6], %s1308
        %s1310 = sand.u32 %s313, 1
        %s1311 = smul.addr %s1310, 8
        %s1312 = scalar_lea.vmem [#allocation5], %s1311
        // Predicated region
        $region73: #{tpu_custom_call.1} parent=71 // pred_check
          %p1313 = pneg %p323
        $region74: #{tpu_custom_call.1} parent=71 // pred_check_branch
          %1315 = sbr.rel (%p1313) target = $region76
        $region75: #{tpu_custom_call.1} parent=71 // pred_region
          %s1317 = ssub.s32 128, 128
          %1318 = vsyncadd %s1309, %s1317
          %s1319 = smul.addr %s27, 128
          %s1320 = scalar_lea.hbm %s13, %s1319
          %s1322 = sshll.u32 %s1312, 4
          %s1323 = int_to_ptr.vmem [resolvable:$true] %s1322
          %1325 = dma.vmem_to_hbm [thread:$0]  %s1323, 128, %s1320, %s1309
        $region76: #{tpu_custom_call.1} parent=71 // pred_fallthru
          _
      $region72: #{tpu_custom_call.1} parent=5 // pred_fallthru
        _
      %p1326 = scmp.le.s32.totalorder 2, %s22
      // Predicated region
      $region77: #{tpu_custom_call.1} parent=5 // pred_check
        %p1327 = pneg %p1326
      $region78: #{tpu_custom_call.1} parent=5 // pred_check_branch
        %1329 = sbr.rel (%p1327) target = $region80
      $region79: #{tpu_custom_call.1} parent=5 // pred_region
        %s1330 = ssub.s32 %s22, 2
        // Predicated region
        $region81: #{tpu_custom_call.1} parent=79 // pred_check
          %p1331 = pneg %p329
        $region82: #{tpu_custom_call.1} parent=79 // pred_check_branch
          %1333 = sbr.rel (%p1331) target = $region84
        $region83: #{tpu_custom_call.1} parent=79 // pred_region
          %s1334 = sand.u32 %s314, 1
          %s1335 = scalar_lea.sflag [#allocation6], %s1334
          %s1336 = sand.u32 %s314, 1
          %s1337 = smul.addr %s1336, 8
          %s1338 = scalar_lea.vmem [#allocation5], %s1337
          %1339 = dma.done %s1335, 128
        $region84: #{tpu_custom_call.1} parent=79 // pred_fallthru
          _
      $region80: #{tpu_custom_call.1} parent=5 // pred_fallthru
        _
    $region6: #{tpu_custom_call.1} parent=1 // loop_footer
      %s26 = sadd.s32 1, %s22
    $region7: #{tpu_custom_call.1} parent=1 // loop_footer_branch
      %21 = sbr.rel target = $region3
    $region8: #{tpu_custom_call.1} parent=1 // loop_exit
      _
    %1340 = vsyncpa [#allocation6], 1
    %s1341 = scalar_lea.sflag [#allocation6], 1
    %1342 = vsyncpa %s1341, 1

</llo_original>
